<compile_context>
chip_gen: v7x
topology: tpu7x:2x2x1
jax: 0.10.0
libtpu: 0.0.40
codegen_flags: <defaults>
</compile_context>

<pallas_src>
import functools

import jax
import jax.numpy as jnp
from jax import lax
from jax.experimental import pallas as pl
from jax.experimental.pallas import tpu as pltpu

# Compute dtype for weights / activations.  Matmul accumulation, gate math and
# the recurrent hidden state stay float32.
DTYPE = jnp.bfloat16


# ----------------------------------------------------------------------------
# Fused multi-layer Linear (+ReLU) kernel, tiled over rows
# ----------------------------------------------------------------------------
def _mlp_kernel(*refs, n_layers, relu):
    # refs = (x_ref, w0, b0, w1, b1, ..., o_ref)
    x_ref, o_ref = refs[0], refs[-1]
    wb = refs[1:-1]
    h = x_ref[...]
    for i in range(n_layers):
        w = wb[2 * i][...]
        b = wb[2 * i + 1][...]
        h = jnp.dot(h.astype(w.dtype), w, preferred_element_type=jnp.float32)
        h = h + b.astype(jnp.float32)
        if relu:
            h = jnp.maximum(h, 0.0)
    o_ref[...] = h.astype(o_ref.dtype)


def _pick_tm(M, tm):
    """Row tile: <= tm, multiple of 8, and (when possible) at least 2 row
    blocks so the 'parallel' grid axis can span both TensorCores on v7x."""
    tm = min(tm, M)
    if M % 8 != 0:
        return M                      # single full block (layout constraint)
    half = ((M // 2 + 7) // 8) * 8
    tm = min(tm, max(8, half))
    return max(8, (tm // 8) * 8)


def mlp(x2d, layers, *, relu, out_dtype=None, tm=512):
    """Apply a stack of Linear(+ReLU) layers to a (M, K) slab in one fused,
    row-tiled pallas_call (intermediates never touch HBM).

    x2d: (M, K); layers: list of (w (in, out), b (1, out))."""
    M, K = x2d.shape
    N = layers[-1][0].shape[1]
    out_dtype = out_dtype if out_dtype is not None else x2d.dtype

    tm = _pick_tm(M, tm)
    grid_m = pl.cdiv(M, tm)

    in_specs = [pl.BlockSpec((tm, K), lambda i: (i, 0))]
    operands = [x2d]
    for (w, b) in layers:
        in_specs.append(pl.BlockSpec(w.shape, lambda i: (0, 0)))
        in_specs.append(pl.BlockSpec(b.shape, lambda i: (0, 0)))
        operands.append(w)
        operands.append(b)

    return pl.pallas_call(
        functools.partial(_mlp_kernel, n_layers=len(layers), relu=relu),
        out_shape=jax.ShapeDtypeStruct((M, N), out_dtype),
        grid=(grid_m,),
        in_specs=in_specs,
        out_specs=pl.BlockSpec((tm, N), lambda i: (i, 0)),
        compiler_params=pltpu.CompilerParams(
            dimension_semantics=("parallel",),
            vmem_limit_bytes=32 * 1024 * 1024),
    )(*operands)


# ----------------------------------------------------------------------------
# GRU layer kernel: fused input-to-hidden matmul + sequential recurrence
# ----------------------------------------------------------------------------
def _gru_kernel(x_ref, wih_ref, bgi_ref, whh_ref, bhn_ref, o_ref,
                h_scratch, gi_scratch, *, tt, residual, unroll):
    # grid = (batch-block ["parallel"], time-chunk ["arbitrary"/sequential])
    @pl.when(pl.program_id(1) == 0)
    def _():
        h_scratch[...] = jnp.zeros_like(h_scratch)

    tb, H = h_scratch.shape
    din = x_ref.shape[-1]

    wih = wih_ref[...]                                  # (Din, 3H) resident
    whh = whh_ref[...]                                  # (H,   3H) resident
    bgi = bgi_ref[...]                                  # (1, 3H) f32 (b_ih + b_hh[r,z])
    bhn = jnp.broadcast_to(bhn_ref[...], (tb, H))       # (tb, H) f32, hoisted

    # ---- prologue: whole-chunk x @ W_ih, kept in f32 VMEM scratch ----------
    if tb % 8 == 0:
        gi = jnp.dot(x_ref[...].reshape(tt * tb, din), wih,
                     preferred_element_type=jnp.float32)
        gi_scratch[...] = (gi + bgi).reshape(tt, tb, 3 * H)
    else:
        # tiny-batch fallback: avoid the sublane-merging reshape
        for t0 in range(tt):
            gi_scratch[t0] = jnp.dot(x_ref[t0], wih,
                                     preferred_element_type=jnp.float32) + bgi

    # ---- sequential recurrence over the chunk -------------------------------
    def step(t, h):
        gi_t = gi_scratch[t]                                       # (tb, 3H) f32
        gh = jnp.dot(h.astype(whh.dtype), whh,
                     preferred_element_type=jnp.float32)           # (tb, 3H) f32
        # PyTorch gate order: r, z, n
        r = jax.nn.sigmoid(gi_t[:, 0:H] + gh[:, 0:H])
        z = jax.nn.sigmoid(gi_t[:, H:2 * H] + gh[:, H:2 * H])
        n = jnp.tanh(gi_t[:, 2 * H:3 * H] + r * (gh[:, 2 * H:3 * H] + bhn))
        h_new = (1.0 - z) * n + z * h
        y = h_new
        if residual:
            y = y + x_ref[t].astype(jnp.float32)
        o_ref[t] = y.astype(o_ref.dtype)
        return h_new

    h_scratch[...] = lax.fori_loop(0, tt, step, h_scratch[...], unroll=unroll)


def gru_layer(x_tbd, wih, bih, whh, bhh, *, residual, out_dtype, tt):
    """One full GRU layer (h0 = 0), time-major.

    x_tbd: (T_pad, B, Din) time-major layer input (T_pad multiple of tt).
    Returns (T_pad, B, H) layer output (post-residual if residual=True)."""
    T_pad, B, Din = x_tbd.shape
    H = whh.shape[0]
    assert T_pad % tt == 0

    # TODO(synk): for B < 8 at inference, the sublane dim is underfilled; a
    # batch-packing restructure would recover VPU/EUP width on the serial path.
    tb = B // 2 if (B % 16 == 0) else B        # split batch across TCs on v7x
    nb = B // tb
    nt = T_pad // tt

    f32 = jnp.float32
    # Fold b_hh's r/z halves into b_ih (valid: r,z = sigmoid(gi + gh) with both
    # biases simply added); only b_hn must stay inside the r*(...) term.
    b_gi = jnp.concatenate(
        [bih[:, :2 * H].astype(f32) + bhh[:, :2 * H].astype(f32),
         bih[:, 2 * H:].astype(f32)], axis=1)               # (1, 3H) f32
    b_hn = bhh[:, 2 * H:].astype(f32)                        # (1, H)  f32

    kernel = functools.partial(_gru_kernel, tt=tt, residual=residual,
                               unroll=min(8, tt))
    return pl.pallas_call(
        kernel,
        out_shape=jax.ShapeDtypeStruct((T_pad, B, H), out_dtype),
        grid=(nb, nt),
        in_specs=[
            pl.BlockSpec((tt, tb, Din), lambda ib, it: (it, ib, 0)),
            pl.BlockSpec((Din, 3 * H), lambda ib, it: (0, 0)),
            pl.BlockSpec((1, 3 * H), lambda ib, it: (0, 0)),
            pl.BlockSpec((H, 3 * H), lambda ib, it: (0, 0)),
            pl.BlockSpec((1, H), lambda ib, it: (0, 0)),
        ],
        out_specs=pl.BlockSpec((tt, tb, H), lambda ib, it: (it, ib, 0)),
        scratch_shapes=[
            pltpu.VMEM((tb, H), jnp.float32),           # carried hidden state
            pltpu.VMEM((tt, tb, 3 * H), jnp.float32),   # chunk gate pre-acts
        ],
        compiler_params=pltpu.CompilerParams(
            dimension_semantics=("parallel", "arbitrary"),
            vmem_limit_bytes=32 * 1024 * 1024),
    )(x_tbd, wih, b_gi, whh, b_hn)


# ----------------------------------------------------------------------------
# Parameter construction (deterministic, synthetic)
# ----------------------------------------------------------------------------
def init_params(key, mel_dim, prenet_layers, prenet_hidden, rnn_layers,
                rnn_hidden, dtype=DTYPE):
    params = {}
    scale = 0.1

    # Prenet: Linear layers mel_dim -> hidden -> ... -> hidden (weights stored
    # pre-transposed as (in, out)).
    in_sizes = [mel_dim] + [prenet_hidden] * (prenet_layers - 1)
    out_sizes = [prenet_hidden] * prenet_layers
    prenet = []
    for i_sz, o_sz in zip(in_sizes, out_sizes):
        key, k1, k2 = jax.random.split(key, 3)
        w = (scale * jax.random.normal(k1, (i_sz, o_sz), jnp.float32)).astype(dtype)
        b = (scale * jax.random.normal(k2, (1, o_sz), jnp.float32)).astype(dtype)
        prenet.append((w, b))
    params['prenet'] = prenet

    # GRU stack (PyTorch gate order r,z,n; weights pre-transposed: (in, 3H)).
    rnn_in = [rnn_hidden] * rnn_layers   # prenet_hidden == rnn input == hidden
    rnns = []
    for i_sz in rnn_in:
        key, k1, k2, k3, k4 = jax.random.split(key, 5)
        wih = (scale * jax.random.normal(k1, (i_sz, 3 * rnn_hidden), jnp.float32)).astype(dtype)
        bih = (scale * jax.random.normal(k2, (1, 3 * rnn_hidden), jnp.float32)).astype(dtype)
        whh = (scale * jax.random.normal(k3, (rnn_hidden, 3 * rnn_hidden), jnp.float32)).astype(dtype)
        bhh = (scale * jax.random.normal(k4, (1, 3 * rnn_hidden), jnp.float32)).astype(dtype)
        rnns.append((wih, bih, whh, bhh))
    params['rnns'] = rnns

    # Postnet: Conv1d(kernel_size=1) == Linear(rnn_hidden -> mel_dim).
    key, k1, k2 = jax.random.split(key, 3)
    w_post = (scale * jax.random.normal(k1, (rnn_hidden, mel_dim), jnp.float32)).astype(dtype)
    b_post = (scale * jax.random.normal(k2, (1, mel_dim), jnp.float32)).astype(dtype)
    params['postnet'] = (w_post, b_post)
    return params


# ----------------------------------------------------------------------------
# APCModel forward
# ----------------------------------------------------------------------------
def apc_forward(params, inputs, lengths=None, *, rnn_residual=True, tt=16, tm=512):
    """inputs: (B, T, mel_dim) -> (predicted_mel, internal_reps).

    internal_reps: (num_rnn_layers + 1, B, T, rnn_hidden)  (+1 for the prenet).
    Dropout layers are identity (inference); residual/internal_reps semantics
    match the reference forward()."""
    del lengths   # unused in the reference forward() as well
    B, T, D = inputs.shape
    dtype = params['postnet'][0].dtype

    # Go time-major once; pad T ONCE (on the narrow mel input) to a multiple of
    # tt.  Padded steps come strictly after T, so the carried hidden state of
    # valid steps is untouched; padded outputs are sliced off at the end.
    x = jnp.transpose(inputs.astype(dtype), (1, 0, 2))   # (T, B, D)
    tt = max(1, min(tt, T))
    T_pad = pl.cdiv(T, tt) * tt
    if T_pad != T:
        x = jnp.pad(x, ((0, T_pad - T), (0, 0), (0, 0)))

    reps = []
    # Prenet: fused per-frame MLP with ReLU (dropout = identity).
    if params['prenet']:
        h = mlp(x.reshape(T_pad * B, D), params['prenet'], relu=True, tm=tm)
        cur = h.reshape(T_pad, B, -1)                    # (T_pad, B, H)
        reps.append(cur)
    else:
        cur = x

    # GRU stack: input-to-hidden matmul fused into the recurrence kernel.
    for (wih, bih, whh, bhh) in params['rnns']:
        H = whh.shape[0]
        residual = rnn_residual and (cur.shape[-1] == H)
        cur = gru_layer(cur, wih, bih, whh, bhh, residual=residual,
                        out_dtype=dtype, tt=tt)
        reps.append(cur)                                 # post-residual, as in ref

    # Postnet: transpose->Conv1d(k=1)->transpose == per-frame Linear.
    # Pad out dim to a lane-dense multiple of 128 (dense stores); slice fuses
    # with the final transpose outside the kernel.
    w_post, b_post = params['postnet']
    mel = w_post.shape[1]
    pad_n = (-mel) % 128
    if pad_n:
        w_post = jnp.pad(w_post, ((0, 0), (0, pad_n)))
        b_post = jnp.pad(b_post, ((0, 0), (0, pad_n)))
    pm = mlp(cur.reshape(T_pad * B, -1), [(w_post, b_post)], relu=False,
             out_dtype=jnp.float32, tm=tm)
    pm = pm.reshape(T_pad, B, -1)[:T, :, :mel]
    predicted_mel = jnp.transpose(pm, (1, 0, 2))         # (B, T, mel)

    # (L+1, T, B, H) -> (L+1, B, T, H); cast fuses with the transpose.
    # TODO(synk): emit the batch-major f32 rep layout from the kernel epilogue
    # to remove this XLA transpose pass entirely.
    internal = jnp.stack([r[:T] for r in reps])
    internal = jnp.transpose(internal, (0, 2, 1, 3)).astype(jnp.float32)
    return predicted_mel, internal


# ----------------------------------------------------------------------------
if __name__ == "__main__":
    # Small config consistent with the module:
    #   mel_dim = prenet.input_size; prenet.hidden == rnn.input == rnn.hidden
    B, T = 2, 8
    MEL_DIM = 32
    PRENET_LAYERS, HIDDEN = 2, 32
    RNN_LAYERS = 3

    key = jax.random.PRNGKey(0)
    key, kx, kp = jax.random.split(key, 3)
    inputs = jax.random.normal(kx, (B, T, MEL_DIM), jnp.float32)
    lengths = jnp.full((B,), T, jnp.int32)

    params = init_params(kp, MEL_DIM, PRENET_LAYERS, HIDDEN, RNN_LAYERS, HIDDEN)

    fwd = jax.jit(apc_forward)
    predicted_mel, internal_reps = fwd(params, inputs, lengths)
    predicted_mel = jax.block_until_ready(predicted_mel)
    internal_reps = jax.block_until_ready(internal_reps)

    assert predicted_mel.shape == (B, T, MEL_DIM)
    assert internal_reps.shape == (RNN_LAYERS + 1, B, T, HIDDEN)
    print("KERNEL_OK")
</pallas_src>

<mosaic_0001>
module attributes {stable_mosaic.version = 11 : i64} {
  func.func @_mlp_kernel(%arg0: i32, %arg1: memref<8x32xbf16, #tpu.memory_space<vmem>>, %arg2: memref<32x32xbf16, #tpu.memory_space<vmem>>, %arg3: memref<1x32xbf16, #tpu.memory_space<vmem>>, %arg4: memref<32x32xbf16, #tpu.memory_space<vmem>>, %arg5: memref<1x32xbf16, #tpu.memory_space<vmem>>, %arg6: memref<8x32xbf16, #tpu.memory_space<vmem>>) attributes {dimension_semantics = [#tpu.dimension_semantics<parallel>], iteration_bounds = array<i64: 2>, scalar_prefetch = 0 : i64, scratch_operands = 0 : i64, tpu.core_type = #tpu.core_type<tc>, window_params = [{transform_indices = @transform_0, window_bounds = array<i64: 8, 32>}, {pipeline_mode = #tpu.pipeline_mode<synchronous>, transform_indices = @transform_1, window_bounds = array<i64: 32, 32>}, {pipeline_mode = #tpu.pipeline_mode<synchronous>, transform_indices = @transform_2, window_bounds = array<i64: 1, 32>}, {pipeline_mode = #tpu.pipeline_mode<synchronous>, transform_indices = @transform_3, window_bounds = array<i64: 32, 32>}, {pipeline_mode = #tpu.pipeline_mode<synchronous>, transform_indices = @transform_4, window_bounds = array<i64: 1, 32>}, {transform_indices = @transform_5, window_bounds = array<i64: 8, 32>}]} {
    %c0 = arith.constant 0 : index
    %c0_0 = arith.constant 0 : index
    %0 = vector.load %arg1[%c0, %c0_0] : memref<8x32xbf16, #tpu.memory_space<vmem>>, vector<8x32xbf16>
    %c0_1 = arith.constant 0 : index
    %c0_2 = arith.constant 0 : index
    %1 = vector.load %arg2[%c0_1, %c0_2] : memref<32x32xbf16, #tpu.memory_space<vmem>>, vector<32x32xbf16>
    %c0_3 = arith.constant 0 : index
    %c0_4 = arith.constant 0 : index
    %2 = vector.load %arg3[%c0_3, %c0_4] : memref<1x32xbf16, #tpu.memory_space<vmem>>, vector<1x32xbf16>
    %cst = arith.constant dense<0.000000e+00> : vector<8x32xf32>
    %3 = tpu.matmul %0, %1, %cst {dimension_numbers = #tpu.dot_dimension_numbers<[1], [0], [0], [1], [0, 0, 1, 1], [], []>} : vector<8x32xbf16>, vector<32x32xbf16>, vector<8x32xf32> -> vector<8x32xf32>
    %4 = arith.extf %2 : vector<1x32xbf16> to vector<1x32xf32>
    %5 = vector.broadcast %4 : vector<1x32xf32> to vector<8x32xf32>
    %6 = arith.addf %3, %5 : vector<8x32xf32>
    %cst_5 = arith.constant 0.000000e+00 : f32
    %7 = vector.broadcast %cst_5 : f32 to vector<8x32xf32>
    %8 = arith.maximumf %6, %7 : vector<8x32xf32>
    %c0_6 = arith.constant 0 : index
    %c0_7 = arith.constant 0 : index
    %9 = vector.load %arg4[%c0_6, %c0_7] : memref<32x32xbf16, #tpu.memory_space<vmem>>, vector<32x32xbf16>
    %c0_8 = arith.constant 0 : index
    %c0_9 = arith.constant 0 : index
    %10 = vector.load %arg5[%c0_8, %c0_9] : memref<1x32xbf16, #tpu.memory_space<vmem>>, vector<1x32xbf16>
    %11 = arith.truncf %8 : vector<8x32xf32> to vector<8x32xbf16>
    %cst_10 = arith.constant dense<0.000000e+00> : vector<8x32xf32>
    %12 = tpu.matmul %11, %9, %cst_10 {dimension_numbers = #tpu.dot_dimension_numbers<[1], [0], [0], [1], [0, 0, 1, 1], [], []>} : vector<8x32xbf16>, vector<32x32xbf16>, vector<8x32xf32> -> vector<8x32xf32>
    %13 = arith.extf %10 : vector<1x32xbf16> to vector<1x32xf32>
    %14 = vector.broadcast %13 : vector<1x32xf32> to vector<8x32xf32>
    %15 = arith.addf %12, %14 : vector<8x32xf32>
    %cst_11 = arith.constant 0.000000e+00 : f32
    %16 = vector.broadcast %cst_11 : f32 to vector<8x32xf32>
    %17 = arith.maximumf %15, %16 : vector<8x32xf32>
    %18 = arith.truncf %17 : vector<8x32xf32> to vector<8x32xbf16>
    %c0_12 = arith.constant 0 : index
    %c0_13 = arith.constant 0 : index
    %19 = vector.load %arg6[%c0_12, %c0_13] : memref<8x32xbf16, #tpu.memory_space<vmem>>, vector<8x32xbf16>
    tpu.vector_store %arg6[%c0_12, %c0_13], %18 {strides = array<i32>} : memref<8x32xbf16, #tpu.memory_space<vmem>>, vector<8x32xbf16>,
    return
  }
  func.func @transform_0(%arg0: i32) -> (i32, i32) {
    %c0_i32 = arith.constant 0 : i32
    %c0_i32_0 = arith.constant 0 : i32
    return %arg0, %c0_i32 : i32, i32
  }
  func.func @transform_1(%arg0: i32) -> (i32, i32) {
    %c0_i32 = arith.constant 0 : i32
    %c0_i32_0 = arith.constant 0 : i32
    %c0_i32_1 = arith.constant 0 : i32
    return %c0_i32, %c0_i32_0 : i32, i32
  }
  func.func @transform_2(%arg0: i32) -> (i32, i32) {
    %c0_i32 = arith.constant 0 : i32
    %c0_i32_0 = arith.constant 0 : i32
    %c0_i32_1 = arith.constant 0 : i32
    return %c0_i32, %c0_i32_0 : i32, i32
  }
  func.func @transform_3(%arg0: i32) -> (i32, i32) {
    %c0_i32 = arith.constant 0 : i32
    %c0_i32_0 = arith.constant 0 : i32
    %c0_i32_1 = arith.constant 0 : i32
    return %c0_i32, %c0_i32_0 : i32, i32
  }
  func.func @transform_4(%arg0: i32) -> (i32, i32) {
    %c0_i32 = arith.constant 0 : i32
    %c0_i32_0 = arith.constant 0 : i32
    %c0_i32_1 = arith.constant 0 : i32
    return %c0_i32, %c0_i32_0 : i32, i32
  }
  func.func @transform_5(%arg0: i32) -> (i32, i32) {
    %c0_i32 = arith.constant 0 : i32
    %c0_i32_0 = arith.constant 0 : i32
    return %arg0, %c0_i32 : i32, i32
  }
}

module attributes {stable_mosaic.version = 11 : i64} {
  func.func @_gru_kernel(%arg0: i32, %arg1: i32, %arg2: memref<8x2x32xbf16, #tpu.memory_space<vmem>>, %arg3: memref<32x96xbf16, #tpu.memory_space<vmem>>, %arg4: memref<1x96xf32, #tpu.memory_space<vmem>>, %arg5: memref<32x96xbf16, #tpu.memory_space<vmem>>, %arg6: memref<1x32xf32, #tpu.memory_space<vmem>>, %arg7: memref<8x2x32xbf16, #tpu.memory_space<vmem>>, %arg8: memref<2x32xf32, #tpu.memory_space<vmem>>, %arg9: memref<8x2x96xf32, #tpu.memory_space<vmem>>) attributes {dimension_semantics = [#tpu.dimension_semantics<parallel>, #tpu.dimension_semantics<arbitrary>], iteration_bounds = array<i64: 1, 1>, scalar_prefetch = 0 : i64, scratch_operands = 2 : i64, tpu.core_type = #tpu.core_type<tc>, window_params = [{transform_indices = @transform_0, window_bounds = array<i64: 8, 2, 32>}, {pipeline_mode = #tpu.pipeline_mode<synchronous>, transform_indices = @transform_1, window_bounds = array<i64: 32, 96>}, {pipeline_mode = #tpu.pipeline_mode<synchronous>, transform_indices = @transform_2, window_bounds = array<i64: 1, 96>}, {pipeline_mode = #tpu.pipeline_mode<synchronous>, transform_indices = @transform_3, window_bounds = array<i64: 32, 96>}, {pipeline_mode = #tpu.pipeline_mode<synchronous>, transform_indices = @transform_4, window_bounds = array<i64: 1, 32>}, {transform_indices = @transform_5, window_bounds = array<i64: 8, 2, 32>}]} {
    %c0_i32 = arith.constant 0 : i32
    %0 = arith.cmpi eq, %arg1, %c0_i32 : i32
    %1 = arith.extui %0 : i1 to i32
    %c0_i32_0 = arith.constant 0 : i32
    %2 = arith.cmpi ne, %1, %c0_i32_0 : i32
    scf.if %2 {
      %cst_141 = arith.constant 0.000000e+00 : f32
      %411 = vector.broadcast %cst_141 : f32 to vector<2x32xf32>
      %c0_142 = arith.constant 0 : index
      %c0_143 = arith.constant 0 : index
      %412 = vector.load %arg8[%c0_142, %c0_143] : memref<2x32xf32, #tpu.memory_space<vmem>>, vector<2x32xf32>
      tpu.vector_store %arg8[%c0_142, %c0_143], %411 {strides = array<i32>} : memref<2x32xf32, #tpu.memory_space<vmem>>, vector<2x32xf32>,
    } else {
    }
    %c0 = arith.constant 0 : index
    %c0_1 = arith.constant 0 : index
    %3 = vector.load %arg3[%c0, %c0_1] : memref<32x96xbf16, #tpu.memory_space<vmem>>, vector<32x96xbf16>
    %c0_2 = arith.constant 0 : index
    %c0_3 = arith.constant 0 : index
    %4 = vector.load %arg5[%c0_2, %c0_3] : memref<32x96xbf16, #tpu.memory_space<vmem>>, vector<32x96xbf16>
    %c0_4 = arith.constant 0 : index
    %c0_5 = arith.constant 0 : index
    %5 = vector.load %arg4[%c0_4, %c0_5] : memref<1x96xf32, #tpu.memory_space<vmem>>, vector<1x96xf32>
    %c0_6 = arith.constant 0 : index
    %c0_7 = arith.constant 0 : index
    %6 = vector.load %arg6[%c0_6, %c0_7] : memref<1x32xf32, #tpu.memory_space<vmem>>, vector<1x32xf32>
    %7 = vector.shape_cast %6 : vector<1x32xf32> to vector<1x32xf32>
    %8 = vector.broadcast %7 : vector<1x32xf32> to vector<2x32xf32>
    %c0_8 = arith.constant 0 : index
    %c0_9 = arith.constant 0 : index
    %c0_10 = arith.constant 0 : index
    %9 = vector.load %arg2[%c0_8, %c0_9, %c0_10] : memref<8x2x32xbf16, #tpu.memory_space<vmem>>, vector<1x2x32xbf16>
    %10 = vector.shape_cast %9 : vector<1x2x32xbf16> to vector<2x32xbf16>
    %cst = arith.constant dense<0.000000e+00> : vector<2x96xf32>
    %11 = tpu.matmul %10, %3, %cst {dimension_numbers = #tpu.dot_dimension_numbers<[1], [0], [0], [1], [0, 0, 1, 1], [], []>} : vector<2x32xbf16>, vector<32x96xbf16>, vector<2x96xf32> -> vector<2x96xf32>
    %12 = vector.broadcast %5 : vector<1x96xf32> to vector<2x96xf32>
    %13 = arith.addf %11, %12 : vector<2x96xf32>
    %c0_11 = arith.constant 0 : index
    %c0_12 = arith.constant 0 : index
    %c0_13 = arith.constant 0 : index
    %14 = vector.load %arg9[%c0_11, %c0_12, %c0_13] : memref<8x2x96xf32, #tpu.memory_space<vmem>>, vector<1x2x96xf32>
    %15 = vector.shape_cast %14 : vector<1x2x96xf32> to vector<2x96xf32>
    %16 = vector.shape_cast %13 : vector<2x96xf32> to vector<1x2x96xf32>
    tpu.vector_store %arg9[%c0_11, %c0_12, %c0_13], %16 {strides = array<i32>} : memref<8x2x96xf32, #tpu.memory_space<vmem>>, vector<1x2x96xf32>,
    %c1 = arith.constant 1 : index
    %c0_14 = arith.constant 0 : index
    %c0_15 = arith.constant 0 : index
    %17 = vector.load %arg2[%c1, %c0_14, %c0_15] : memref<8x2x32xbf16, #tpu.memory_space<vmem>>, vector<1x2x32xbf16>
    %18 = vector.shape_cast %17 : vector<1x2x32xbf16> to vector<2x32xbf16>
    %cst_16 = arith.constant dense<0.000000e+00> : vector<2x96xf32>
    %19 = tpu.matmul %18, %3, %cst_16 {dimension_numbers = #tpu.dot_dimension_numbers<[1], [0], [0], [1], [0, 0, 1, 1], [], []>} : vector<2x32xbf16>, vector<32x96xbf16>, vector<2x96xf32> -> vector<2x96xf32>
    %20 = vector.broadcast %5 : vector<1x96xf32> to vector<2x96xf32>
    %21 = arith.addf %19, %20 : vector<2x96xf32>
    %c1_17 = arith.constant 1 : index
    %c0_18 = arith.constant 0 : index
    %c0_19 = arith.constant 0 : index
    %22 = vector.load %arg9[%c1_17, %c0_18, %c0_19] : memref<8x2x96xf32, #tpu.memory_space<vmem>>, vector<1x2x96xf32>
    %23 = vector.shape_cast %22 : vector<1x2x96xf32> to vector<2x96xf32>
    %24 = vector.shape_cast %21 : vector<2x96xf32> to vector<1x2x96xf32>
    tpu.vector_store %arg9[%c1_17, %c0_18, %c0_19], %24 {strides = array<i32>} : memref<8x2x96xf32, #tpu.memory_space<vmem>>, vector<1x2x96xf32>,
    %c2 = arith.constant 2 : index
    %c0_20 = arith.constant 0 : index
    %c0_21 = arith.constant 0 : index
    %25 = vector.load %arg2[%c2, %c0_20, %c0_21] : memref<8x2x32xbf16, #tpu.memory_space<vmem>>, vector<1x2x32xbf16>
    %26 = vector.shape_cast %25 : vector<1x2x32xbf16> to vector<2x32xbf16>
    %cst_22 = arith.constant dense<0.000000e+00> : vector<2x96xf32>
    %27 = tpu.matmul %26, %3, %cst_22 {dimension_numbers = #tpu.dot_dimension_numbers<[1], [0], [0], [1], [0, 0, 1, 1], [], []>} : vector<2x32xbf16>, vector<32x96xbf16>, vector<2x96xf32> -> vector<2x96xf32>
    %28 = vector.broadcast %5 : vector<1x96xf32> to vector<2x96xf32>
    %29 = arith.addf %27, %28 : vector<2x96xf32>
    %c2_23 = arith.constant 2 : index
    %c0_24 = arith.constant 0 : index
    %c0_25 = arith.constant 0 : index
    %30 = vector.load %arg9[%c2_23, %c0_24, %c0_25] : memref<8x2x96xf32, #tpu.memory_space<vmem>>, vector<1x2x96xf32>
    %31 = vector.shape_cast %30 : vector<1x2x96xf32> to vector<2x96xf32>
    %32 = vector.shape_cast %29 : vector<2x96xf32> to vector<1x2x96xf32>
    tpu.vector_store %arg9[%c2_23, %c0_24, %c0_25], %32 {strides = array<i32>} : memref<8x2x96xf32, #tpu.memory_space<vmem>>, vector<1x2x96xf32>,
    %c3 = arith.constant 3 : index
    %c0_26 = arith.constant 0 : index
    %c0_27 = arith.constant 0 : index
    %33 = vector.load %arg2[%c3, %c0_26, %c0_27] : memref<8x2x32xbf16, #tpu.memory_space<vmem>>, vector<1x2x32xbf16>
    %34 = vector.shape_cast %33 : vector<1x2x32xbf16> to vector<2x32xbf16>
    %cst_28 = arith.constant dense<0.000000e+00> : vector<2x96xf32>
    %35 = tpu.matmul %34, %3, %cst_28 {dimension_numbers = #tpu.dot_dimension_numbers<[1], [0], [0], [1], [0, 0, 1, 1], [], []>} : vector<2x32xbf16>, vector<32x96xbf16>, vector<2x96xf32> -> vector<2x96xf32>
    %36 = vector.broadcast %5 : vector<1x96xf32> to vector<2x96xf32>
    %37 = arith.addf %35, %36 : vector<2x96xf32>
    %c3_29 = arith.constant 3 : index
    %c0_30 = arith.constant 0 : index
    %c0_31 = arith.constant 0 : index
    %38 = vector.load %arg9[%c3_29, %c0_30, %c0_31] : memref<8x2x96xf32, #tpu.memory_space<vmem>>, vector<1x2x96xf32>
    %39 = vector.shape_cast %38 : vector<1x2x96xf32> to vector<2x96xf32>
    %40 = vector.shape_cast %37 : vector<2x96xf32> to vector<1x2x96xf32>
    tpu.vector_store %arg9[%c3_29, %c0_30, %c0_31], %40 {strides = array<i32>} : memref<8x2x96xf32, #tpu.memory_space<vmem>>, vector<1x2x96xf32>,
    %c4 = arith.constant 4 : index
    %c0_32 = arith.constant 0 : index
    %c0_33 = arith.constant 0 : index
    %41 = vector.load %arg2[%c4, %c0_32, %c0_33] : memref<8x2x32xbf16, #tpu.memory_space<vmem>>, vector<1x2x32xbf16>
    %42 = vector.shape_cast %41 : vector<1x2x32xbf16> to vector<2x32xbf16>
    %cst_34 = arith.constant dense<0.000000e+00> : vector<2x96xf32>
    %43 = tpu.matmul %42, %3, %cst_34 {dimension_numbers = #tpu.dot_dimension_numbers<[1], [0], [0], [1], [0, 0, 1, 1], [], []>} : vector<2x32xbf16>, vector<32x96xbf16>, vector<2x96xf32> -> vector<2x96xf32>
    %44 = vector.broadcast %5 : vector<1x96xf32> to vector<2x96xf32>
    %45 = arith.addf %43, %44 : vector<2x96xf32>
    %c4_35 = arith.constant 4 : index
    %c0_36 = arith.constant 0 : index
    %c0_37 = arith.constant 0 : index
    %46 = vector.load %arg9[%c4_35, %c0_36, %c0_37] : memref<8x2x96xf32, #tpu.memory_space<vmem>>, vector<1x2x96xf32>
    %47 = vector.shape_cast %46 : vector<1x2x96xf32> to vector<2x96xf32>
    %48 = vector.shape_cast %45 : vector<2x96xf32> to vector<1x2x96xf32>
    tpu.vector_store %arg9[%c4_35, %c0_36, %c0_37], %48 {strides = array<i32>} : memref<8x2x96xf32, #tpu.memory_space<vmem>>, vector<1x2x96xf32>,
    %c5 = arith.constant 5 : index
    %c0_38 = arith.constant 0 : index
    %c0_39 = arith.constant 0 : index
    %49 = vector.load %arg2[%c5, %c0_38, %c0_39] : memref<8x2x32xbf16, #tpu.memory_space<vmem>>, vector<1x2x32xbf16>
    %50 = vector.shape_cast %49 : vector<1x2x32xbf16> to vector<2x32xbf16>
    %cst_40 = arith.constant dense<0.000000e+00> : vector<2x96xf32>
    %51 = tpu.matmul %50, %3, %cst_40 {dimension_numbers = #tpu.dot_dimension_numbers<[1], [0], [0], [1], [0, 0, 1, 1], [], []>} : vector<2x32xbf16>, vector<32x96xbf16>, vector<2x96xf32> -> vector<2x96xf32>
    %52 = vector.broadcast %5 : vector<1x96xf32> to vector<2x96xf32>
    %53 = arith.addf %51, %52 : vector<2x96xf32>
    %c5_41 = arith.constant 5 : index
    %c0_42 = arith.constant 0 : index
    %c0_43 = arith.constant 0 : index
    %54 = vector.load %arg9[%c5_41, %c0_42, %c0_43] : memref<8x2x96xf32, #tpu.memory_space<vmem>>, vector<1x2x96xf32>
    %55 = vector.shape_cast %54 : vector<1x2x96xf32> to vector<2x96xf32>
    %56 = vector.shape_cast %53 : vector<2x96xf32> to vector<1x2x96xf32>
    tpu.vector_store %arg9[%c5_41, %c0_42, %c0_43], %56 {strides = array<i32>} : memref<8x2x96xf32, #tpu.memory_space<vmem>>, vector<1x2x96xf32>,
    %c6 = arith.constant 6 : index
    %c0_44 = arith.constant 0 : index
    %c0_45 = arith.constant 0 : index
    %57 = vector.load %arg2[%c6, %c0_44, %c0_45] : memref<8x2x32xbf16, #tpu.memory_space<vmem>>, vector<1x2x32xbf16>
    %58 = vector.shape_cast %57 : vector<1x2x32xbf16> to vector<2x32xbf16>
    %cst_46 = arith.constant dense<0.000000e+00> : vector<2x96xf32>
    %59 = tpu.matmul %58, %3, %cst_46 {dimension_numbers = #tpu.dot_dimension_numbers<[1], [0], [0], [1], [0, 0, 1, 1], [], []>} : vector<2x32xbf16>, vector<32x96xbf16>, vector<2x96xf32> -> vector<2x96xf32>
    %60 = vector.broadcast %5 : vector<1x96xf32> to vector<2x96xf32>
    %61 = arith.addf %59, %60 : vector<2x96xf32>
    %c6_47 = arith.constant 6 : index
    %c0_48 = arith.constant 0 : index
    %c0_49 = arith.constant 0 : index
    %62 = vector.load %arg9[%c6_47, %c0_48, %c0_49] : memref<8x2x96xf32, #tpu.memory_space<vmem>>, vector<1x2x96xf32>
    %63 = vector.shape_cast %62 : vector<1x2x96xf32> to vector<2x96xf32>
    %64 = vector.shape_cast %61 : vector<2x96xf32> to vector<1x2x96xf32>
    tpu.vector_store %arg9[%c6_47, %c0_48, %c0_49], %64 {strides = array<i32>} : memref<8x2x96xf32, #tpu.memory_space<vmem>>, vector<1x2x96xf32>,
    %c7 = arith.constant 7 : index
    %c0_50 = arith.constant 0 : index
    %c0_51 = arith.constant 0 : index
    %65 = vector.load %arg2[%c7, %c0_50, %c0_51] : memref<8x2x32xbf16, #tpu.memory_space<vmem>>, vector<1x2x32xbf16>
    %66 = vector.shape_cast %65 : vector<1x2x32xbf16> to vector<2x32xbf16>
    %cst_52 = arith.constant dense<0.000000e+00> : vector<2x96xf32>
    %67 = tpu.matmul %66, %3, %cst_52 {dimension_numbers = #tpu.dot_dimension_numbers<[1], [0], [0], [1], [0, 0, 1, 1], [], []>} : vector<2x32xbf16>, vector<32x96xbf16>, vector<2x96xf32> -> vector<2x96xf32>
    %68 = vector.broadcast %5 : vector<1x96xf32> to vector<2x96xf32>
    %69 = arith.addf %67, %68 : vector<2x96xf32>
    %c7_53 = arith.constant 7 : index
    %c0_54 = arith.constant 0 : index
    %c0_55 = arith.constant 0 : index
    %70 = vector.load %arg9[%c7_53, %c0_54, %c0_55] : memref<8x2x96xf32, #tpu.memory_space<vmem>>, vector<1x2x96xf32>
    %71 = vector.shape_cast %70 : vector<1x2x96xf32> to vector<2x96xf32>
    %72 = vector.shape_cast %69 : vector<2x96xf32> to vector<1x2x96xf32>
    tpu.vector_store %arg9[%c7_53, %c0_54, %c0_55], %72 {strides = array<i32>} : memref<8x2x96xf32, #tpu.memory_space<vmem>>, vector<1x2x96xf32>,
    %c0_56 = arith.constant 0 : index
    %c0_57 = arith.constant 0 : index
    %73 = vector.load %arg8[%c0_56, %c0_57] : memref<2x32xf32, #tpu.memory_space<vmem>>, vector<2x32xf32>
    %c0_i32_58 = arith.constant 0 : i32
    %74 = arith.index_cast %c0_i32_58 : i32 to index
    %c0_59 = arith.constant 0 : index
    %c0_60 = arith.constant 0 : index
    %75 = vector.load %arg9[%74, %c0_59, %c0_60] : memref<8x2x96xf32, #tpu.memory_space<vmem>>, vector<1x2x96xf32>
    %76 = vector.shape_cast %75 : vector<1x2x96xf32> to vector<2x96xf32>
    %77 = arith.truncf %73 : vector<2x32xf32> to vector<2x32xbf16>
    %cst_61 = arith.constant dense<0.000000e+00> : vector<2x96xf32>
    %78 = tpu.matmul %77, %4, %cst_61 {dimension_numbers = #tpu.dot_dimension_numbers<[1], [0], [0], [1], [0, 0, 1, 1], [], []>} : vector<2x32xbf16>, vector<32x96xbf16>, vector<2x96xf32> -> vector<2x96xf32>
    %79 = vector.extract_strided_slice %76 {offsets = [0, 0], sizes = [2, 32], strides = [1, 1]} : vector<2x96xf32> to vector<2x32xf32>
    %80 = vector.extract_strided_slice %78 {offsets = [0, 0], sizes = [2, 32], strides = [1, 1]} : vector<2x96xf32> to vector<2x32xf32>
    %81 = arith.addf %79, %80 : vector<2x32xf32>
    %82 = arith.negf %81 : vector<2x32xf32>
    %83 = math.exp %82 : vector<2x32xf32>
    %cst_62 = arith.constant 1.000000e+00 : f32
    %84 = vector.broadcast %cst_62 : f32 to vector<2x32xf32>
    %85 = arith.addf %84, %83 : vector<2x32xf32>
    %86 = arith.divf %84, %85 : vector<2x32xf32>
    %87 = vector.extract_strided_slice %76 {offsets = [0, 32], sizes = [2, 32], strides = [1, 1]} : vector<2x96xf32> to vector<2x32xf32>
    %88 = vector.extract_strided_slice %78 {offsets = [0, 32], sizes = [2, 32], strides = [1, 1]} : vector<2x96xf32> to vector<2x32xf32>
    %89 = arith.addf %87, %88 : vector<2x32xf32>
    %90 = arith.negf %89 : vector<2x32xf32>
    %91 = math.exp %90 : vector<2x32xf32>
    %cst_63 = arith.constant 1.000000e+00 : f32
    %92 = vector.broadcast %cst_63 : f32 to vector<2x32xf32>
    %93 = arith.addf %92, %91 : vector<2x32xf32>
    %94 = arith.divf %92, %93 : vector<2x32xf32>
    %95 = vector.extract_strided_slice %76 {offsets = [0, 64], sizes = [2, 32], strides = [1, 1]} : vector<2x96xf32> to vector<2x32xf32>
    %96 = vector.extract_strided_slice %78 {offsets = [0, 64], sizes = [2, 32], strides = [1, 1]} : vector<2x96xf32> to vector<2x32xf32>
    %97 = arith.addf %96, %8 : vector<2x32xf32>
    %98 = arith.mulf %86, %97 : vector<2x32xf32>
    %99 = arith.addf %95, %98 : vector<2x32xf32>
    %100 = math.tanh %99 : vector<2x32xf32>
    %cst_64 = arith.constant 1.000000e+00 : f32
    %101 = vector.broadcast %cst_64 : f32 to vector<2x32xf32>
    %102 = arith.subf %101, %94 : vector<2x32xf32>
    %103 = arith.mulf %102, %100 : vector<2x32xf32>
    %104 = arith.mulf %94, %73 : vector<2x32xf32>
    %105 = arith.addf %103, %104 : vector<2x32xf32>
    %106 = arith.index_cast %c0_i32_58 : i32 to index
    %c0_65 = arith.constant 0 : index
    %c0_66 = arith.constant 0 : index
    %107 = vector.load %arg2[%106, %c0_65, %c0_66] : memref<8x2x32xbf16, #tpu.memory_space<vmem>>, vector<1x2x32xbf16>
    %108 = vector.shape_cast %107 : vector<1x2x32xbf16> to vector<2x32xbf16>
    %109 = arith.extf %108 : vector<2x32xbf16> to vector<2x32xf32>
    %110 = arith.addf %105, %109 : vector<2x32xf32>
    %111 = arith.truncf %110 : vector<2x32xf32> to vector<2x32xbf16>
    %112 = arith.index_cast %c0_i32_58 : i32 to index
    %c0_67 = arith.constant 0 : index
    %c0_68 = arith.constant 0 : index
    %113 = vector.load %arg7[%112, %c0_67, %c0_68] : memref<8x2x32xbf16, #tpu.memory_space<vmem>>, vector<1x2x32xbf16>
    %114 = vector.shape_cast %113 : vector<1x2x32xbf16> to vector<2x32xbf16>
    %115 = vector.shape_cast %111 : vector<2x32xbf16> to vector<1x2x32xbf16>
    tpu.vector_store %arg7[%112, %c0_67, %c0_68], %115 {strides = array<i32>} : memref<8x2x32xbf16, #tpu.memory_space<vmem>>, vector<1x2x32xbf16>,
    %c1_i32 = arith.constant 1 : i32
    %116 = arith.index_cast %c1_i32 : i32 to index
    %c0_69 = arith.constant 0 : index
    %c0_70 = arith.constant 0 : index
    %117 = vector.load %arg9[%116, %c0_69, %c0_70] : memref<8x2x96xf32, #tpu.memory_space<vmem>>, vector<1x2x96xf32>
    %118 = vector.shape_cast %117 : vector<1x2x96xf32> to vector<2x96xf32>
    %119 = arith.truncf %105 : vector<2x32xf32> to vector<2x32xbf16>
    %cst_71 = arith.constant dense<0.000000e+00> : vector<2x96xf32>
    %120 = tpu.matmul %119, %4, %cst_71 {dimension_numbers = #tpu.dot_dimension_numbers<[1], [0], [0], [1], [0, 0, 1, 1], [], []>} : vector<2x32xbf16>, vector<32x96xbf16>, vector<2x96xf32> -> vector<2x96xf32>
    %121 = vector.extract_strided_slice %118 {offsets = [0, 0], sizes = [2, 32], strides = [1, 1]} : vector<2x96xf32> to vector<2x32xf32>
    %122 = vector.extract_strided_slice %120 {offsets = [0, 0], sizes = [2, 32], strides = [1, 1]} : vector<2x96xf32> to vector<2x32xf32>
    %123 = arith.addf %121, %122 : vector<2x32xf32>
    %124 = arith.negf %123 : vector<2x32xf32>
    %125 = math.exp %124 : vector<2x32xf32>
    %cst_72 = arith.constant 1.000000e+00 : f32
    %126 = vector.broadcast %cst_72 : f32 to vector<2x32xf32>
    %127 = arith.addf %126, %125 : vector<2x32xf32>
    %128 = arith.divf %126, %127 : vector<2x32xf32>
    %129 = vector.extract_strided_slice %118 {offsets = [0, 32], sizes = [2, 32], strides = [1, 1]} : vector<2x96xf32> to vector<2x32xf32>
    %130 = vector.extract_strided_slice %120 {offsets = [0, 32], sizes = [2, 32], strides = [1, 1]} : vector<2x96xf32> to vector<2x32xf32>
    %131 = arith.addf %129, %130 : vector<2x32xf32>
    %132 = arith.negf %131 : vector<2x32xf32>
    %133 = math.exp %132 : vector<2x32xf32>
    %cst_73 = arith.constant 1.000000e+00 : f32
    %134 = vector.broadcast %cst_73 : f32 to vector<2x32xf32>
    %135 = arith.addf %134, %133 : vector<2x32xf32>
    %136 = arith.divf %134, %135 : vector<2x32xf32>
    %137 = vector.extract_strided_slice %118 {offsets = [0, 64], sizes = [2, 32], strides = [1, 1]} : vector<2x96xf32> to vector<2x32xf32>
    %138 = vector.extract_strided_slice %120 {offsets = [0, 64], sizes = [2, 32], strides = [1, 1]} : vector<2x96xf32> to vector<2x32xf32>
    %139 = arith.addf %138, %8 : vector<2x32xf32>
    %140 = arith.mulf %128, %139 : vector<2x32xf32>
    %141 = arith.addf %137, %140 : vector<2x32xf32>
    %142 = math.tanh %141 : vector<2x32xf32>
    %cst_74 = arith.constant 1.000000e+00 : f32
    %143 = vector.broadcast %cst_74 : f32 to vector<2x32xf32>
    %144 = arith.subf %143, %136 : vector<2x32xf32>
    %145 = arith.mulf %144, %142 : vector<2x32xf32>
    %146 = arith.mulf %136, %105 : vector<2x32xf32>
    %147 = arith.addf %145, %146 : vector<2x32xf32>
    %148 = arith.index_cast %c1_i32 : i32 to index
    %c0_75 = arith.constant 0 : index
    %c0_76 = arith.constant 0 : index
    %149 = vector.load %arg2[%148, %c0_75, %c0_76] : memref<8x2x32xbf16, #tpu.memory_space<vmem>>, vector<1x2x32xbf16>
    %150 = vector.shape_cast %149 : vector<1x2x32xbf16> to vector<2x32xbf16>
    %151 = arith.extf %150 : vector<2x32xbf16> to vector<2x32xf32>
    %152 = arith.addf %147, %151 : vector<2x32xf32>
    %153 = arith.truncf %152 : vector<2x32xf32> to vector<2x32xbf16>
    %154 = arith.index_cast %c1_i32 : i32 to index
    %c0_77 = arith.constant 0 : index
    %c0_78 = arith.constant 0 : index
    %155 = vector.load %arg7[%154, %c0_77, %c0_78] : memref<8x2x32xbf16, #tpu.memory_space<vmem>>, vector<1x2x32xbf16>
    %156 = vector.shape_cast %155 : vector<1x2x32xbf16> to vector<2x32xbf16>
    %157 = vector.shape_cast %153 : vector<2x32xbf16> to vector<1x2x32xbf16>
    tpu.vector_store %arg7[%154, %c0_77, %c0_78], %157 {strides = array<i32>} : memref<8x2x32xbf16, #tpu.memory_space<vmem>>, vector<1x2x32xbf16>,
    %c2_i32 = arith.constant 2 : i32
    %158 = arith.index_cast %c2_i32 : i32 to index
    %c0_79 = arith.constant 0 : index
    %c0_80 = arith.constant 0 : index
    %159 = vector.load %arg9[%158, %c0_79, %c0_80] : memref<8x2x96xf32, #tpu.memory_space<vmem>>, vector<1x2x96xf32>
    %160 = vector.shape_cast %159 : vector<1x2x96xf32> to vector<2x96xf32>
    %161 = arith.truncf %147 : vector<2x32xf32> to vector<2x32xbf16>
    %cst_81 = arith.constant dense<0.000000e+00> : vector<2x96xf32>
    %162 = tpu.matmul %161, %4, %cst_81 {dimension_numbers = #tpu.dot_dimension_numbers<[1], [0], [0], [1], [0, 0, 1, 1], [], []>} : vector<2x32xbf16>, vector<32x96xbf16>, vector<2x96xf32> -> vector<2x96xf32>
    %163 = vector.extract_strided_slice %160 {offsets = [0, 0], sizes = [2, 32], strides = [1, 1]} : vector<2x96xf32> to vector<2x32xf32>
    %164 = vector.extract_strided_slice %162 {offsets = [0, 0], sizes = [2, 32], strides = [1, 1]} : vector<2x96xf32> to vector<2x32xf32>
    %165 = arith.addf %163, %164 : vector<2x32xf32>
    %166 = arith.negf %165 : vector<2x32xf32>
    %167 = math.exp %166 : vector<2x32xf32>
    %cst_82 = arith.constant 1.000000e+00 : f32
    %168 = vector.broadcast %cst_82 : f32 to vector<2x32xf32>
    %169 = arith.addf %168, %167 : vector<2x32xf32>
    %170 = arith.divf %168, %169 : vector<2x32xf32>
    %171 = vector.extract_strided_slice %160 {offsets = [0, 32], sizes = [2, 32], strides = [1, 1]} : vector<2x96xf32> to vector<2x32xf32>
    %172 = vector.extract_strided_slice %162 {offsets = [0, 32], sizes = [2, 32], strides = [1, 1]} : vector<2x96xf32> to vector<2x32xf32>
    %173 = arith.addf %171, %172 : vector<2x32xf32>
    %174 = arith.negf %173 : vector<2x32xf32>
    %175 = math.exp %174 : vector<2x32xf32>
    %cst_83 = arith.constant 1.000000e+00 : f32
    %176 = vector.broadcast %cst_83 : f32 to vector<2x32xf32>
    %177 = arith.addf %176, %175 : vector<2x32xf32>
    %178 = arith.divf %176, %177 : vector<2x32xf32>
    %179 = vector.extract_strided_slice %160 {offsets = [0, 64], sizes = [2, 32], strides = [1, 1]} : vector<2x96xf32> to vector<2x32xf32>
    %180 = vector.extract_strided_slice %162 {offsets = [0, 64], sizes = [2, 32], strides = [1, 1]} : vector<2x96xf32> to vector<2x32xf32>
    %181 = arith.addf %180, %8 : vector<2x32xf32>
    %182 = arith.mulf %170, %181 : vector<2x32xf32>
    %183 = arith.addf %179, %182 : vector<2x32xf32>
    %184 = math.tanh %183 : vector<2x32xf32>
    %cst_84 = arith.constant 1.000000e+00 : f32
    %185 = vector.broadcast %cst_84 : f32 to vector<2x32xf32>
    %186 = arith.subf %185, %178 : vector<2x32xf32>
    %187 = arith.mulf %186, %184 : vector<2x32xf32>
    %188 = arith.mulf %178, %147 : vector<2x32xf32>
    %189 = arith.addf %187, %188 : vector<2x32xf32>
    %190 = arith.index_cast %c2_i32 : i32 to index
    %c0_85 = arith.constant 0 : index
    %c0_86 = arith.constant 0 : index
    %191 = vector.load %arg2[%190, %c0_85, %c0_86] : memref<8x2x32xbf16, #tpu.memory_space<vmem>>, vector<1x2x32xbf16>
    %192 = vector.shape_cast %191 : vector<1x2x32xbf16> to vector<2x32xbf16>
    %193 = arith.extf %192 : vector<2x32xbf16> to vector<2x32xf32>
    %194 = arith.addf %189, %193 : vector<2x32xf32>
    %195 = arith.truncf %194 : vector<2x32xf32> to vector<2x32xbf16>
    %196 = arith.index_cast %c2_i32 : i32 to index
    %c0_87 = arith.constant 0 : index
    %c0_88 = arith.constant 0 : index
    %197 = vector.load %arg7[%196, %c0_87, %c0_88] : memref<8x2x32xbf16, #tpu.memory_space<vmem>>, vector<1x2x32xbf16>
    %198 = vector.shape_cast %197 : vector<1x2x32xbf16> to vector<2x32xbf16>
    %199 = vector.shape_cast %195 : vector<2x32xbf16> to vector<1x2x32xbf16>
    tpu.vector_store %arg7[%196, %c0_87, %c0_88], %199 {strides = array<i32>} : memref<8x2x32xbf16, #tpu.memory_space<vmem>>, vector<1x2x32xbf16>,
    %c3_i32 = arith.constant 3 : i32
    %200 = arith.index_cast %c3_i32 : i32 to index
    %c0_89 = arith.constant 0 : index
    %c0_90 = arith.constant 0 : index
    %201 = vector.load %arg9[%200, %c0_89, %c0_90] : memref<8x2x96xf32, #tpu.memory_space<vmem>>, vector<1x2x96xf32>
    %202 = vector.shape_cast %201 : vector<1x2x96xf32> to vector<2x96xf32>
    %203 = arith.truncf %189 : vector<2x32xf32> to vector<2x32xbf16>
    %cst_91 = arith.constant dense<0.000000e+00> : vector<2x96xf32>
    %204 = tpu.matmul %203, %4, %cst_91 {dimension_numbers = #tpu.dot_dimension_numbers<[1], [0], [0], [1], [0, 0, 1, 1], [], []>} : vector<2x32xbf16>, vector<32x96xbf16>, vector<2x96xf32> -> vector<2x96xf32>
    %205 = vector.extract_strided_slice %202 {offsets = [0, 0], sizes = [2, 32], strides = [1, 1]} : vector<2x96xf32> to vector<2x32xf32>
    %206 = vector.extract_strided_slice %204 {offsets = [0, 0], sizes = [2, 32], strides = [1, 1]} : vector<2x96xf32> to vector<2x32xf32>
    %207 = arith.addf %205, %206 : vector<2x32xf32>
    %208 = arith.negf %207 : vector<2x32xf32>
    %209 = math.exp %208 : vector<2x32xf32>
    %cst_92 = arith.constant 1.000000e+00 : f32
    %210 = vector.broadcast %cst_92 : f32 to vector<2x32xf32>
    %211 = arith.addf %210, %209 : vector<2x32xf32>
    %212 = arith.divf %210, %211 : vector<2x32xf32>
    %213 = vector.extract_strided_slice %202 {offsets = [0, 32], sizes = [2, 32], strides = [1, 1]} : vector<2x96xf32> to vector<2x32xf32>
    %214 = vector.extract_strided_slice %204 {offsets = [0, 32], sizes = [2, 32], strides = [1, 1]} : vector<2x96xf32> to vector<2x32xf32>
    %215 = arith.addf %213, %214 : vector<2x32xf32>
    %216 = arith.negf %215 : vector<2x32xf32>
    %217 = math.exp %216 : vector<2x32xf32>
    %cst_93 = arith.constant 1.000000e+00 : f32
    %218 = vector.broadcast %cst_93 : f32 to vector<2x32xf32>
    %219 = arith.addf %218, %217 : vector<2x32xf32>
    %220 = arith.divf %218, %219 : vector<2x32xf32>
    %221 = vector.extract_strided_slice %202 {offsets = [0, 64], sizes = [2, 32], strides = [1, 1]} : vector<2x96xf32> to vector<2x32xf32>
    %222 = vector.extract_strided_slice %204 {offsets = [0, 64], sizes = [2, 32], strides = [1, 1]} : vector<2x96xf32> to vector<2x32xf32>
    %223 = arith.addf %222, %8 : vector<2x32xf32>
    %224 = arith.mulf %212, %223 : vector<2x32xf32>
    %225 = arith.addf %221, %224 : vector<2x32xf32>
    %226 = math.tanh %225 : vector<2x32xf32>
    %cst_94 = arith.constant 1.000000e+00 : f32
    %227 = vector.broadcast %cst_94 : f32 to vector<2x32xf32>
    %228 = arith.subf %227, %220 : vector<2x32xf32>
    %229 = arith.mulf %228, %226 : vector<2x32xf32>
    %230 = arith.mulf %220, %189 : vector<2x32xf32>
    %231 = arith.addf %229, %230 : vector<2x32xf32>
    %232 = arith.index_cast %c3_i32 : i32 to index
    %c0_95 = arith.constant 0 : index
    %c0_96 = arith.constant 0 : index
    %233 = vector.load %arg2[%232, %c0_95, %c0_96] : memref<8x2x32xbf16, #tpu.memory_space<vmem>>, vector<1x2x32xbf16>
    %234 = vector.shape_cast %233 : vector<1x2x32xbf16> to vector<2x32xbf16>
    %235 = arith.extf %234 : vector<2x32xbf16> to vector<2x32xf32>
    %236 = arith.addf %231, %235 : vector<2x32xf32>
    %237 = arith.truncf %236 : vector<2x32xf32> to vector<2x32xbf16>
    %238 = arith.index_cast %c3_i32 : i32 to index
    %c0_97 = arith.constant 0 : index
    %c0_98 = arith.constant 0 : index
    %239 = vector.load %arg7[%238, %c0_97, %c0_98] : memref<8x2x32xbf16, #tpu.memory_space<vmem>>, vector<1x2x32xbf16>
    %240 = vector.shape_cast %239 : vector<1x2x32xbf16> to vector<2x32xbf16>
    %241 = vector.shape_cast %237 : vector<2x32xbf16> to vector<1x2x32xbf16>
    tpu.vector_store %arg7[%238, %c0_97, %c0_98], %241 {strides = array<i32>} : memref<8x2x32xbf16, #tpu.memory_space<vmem>>, vector<1x2x32xbf16>,
    %c4_i32 = arith.constant 4 : i32
    %242 = arith.index_cast %c4_i32 : i32 to index
    %c0_99 = arith.constant 0 : index
    %c0_100 = arith.constant 0 : index
    %243 = vector.load %arg9[%242, %c0_99, %c0_100] : memref<8x2x96xf32, #tpu.memory_space<vmem>>, vector<1x2x96xf32>
    %244 = vector.shape_cast %243 : vector<1x2x96xf32> to vector<2x96xf32>
    %245 = arith.truncf %231 : vector<2x32xf32> to vector<2x32xbf16>
    %cst_101 = arith.constant dense<0.000000e+00> : vector<2x96xf32>
    %246 = tpu.matmul %245, %4, %cst_101 {dimension_numbers = #tpu.dot_dimension_numbers<[1], [0], [0], [1], [0, 0, 1, 1], [], []>} : vector<2x32xbf16>, vector<32x96xbf16>, vector<2x96xf32> -> vector<2x96xf32>
    %247 = vector.extract_strided_slice %244 {offsets = [0, 0], sizes = [2, 32], strides = [1, 1]} : vector<2x96xf32> to vector<2x32xf32>
    %248 = vector.extract_strided_slice %246 {offsets = [0, 0], sizes = [2, 32], strides = [1, 1]} : vector<2x96xf32> to vector<2x32xf32>
    %249 = arith.addf %247, %248 : vector<2x32xf32>
    %250 = arith.negf %249 : vector<2x32xf32>
    %251 = math.exp %250 : vector<2x32xf32>
    %cst_102 = arith.constant 1.000000e+00 : f32
    %252 = vector.broadcast %cst_102 : f32 to vector<2x32xf32>
    %253 = arith.addf %252, %251 : vector<2x32xf32>
    %254 = arith.divf %252, %253 : vector<2x32xf32>
    %255 = vector.extract_strided_slice %244 {offsets = [0, 32], sizes = [2, 32], strides = [1, 1]} : vector<2x96xf32> to vector<2x32xf32>
    %256 = vector.extract_strided_slice %246 {offsets = [0, 32], sizes = [2, 32], strides = [1, 1]} : vector<2x96xf32> to vector<2x32xf32>
    %257 = arith.addf %255, %256 : vector<2x32xf32>
    %258 = arith.negf %257 : vector<2x32xf32>
    %259 = math.exp %258 : vector<2x32xf32>
    %cst_103 = arith.constant 1.000000e+00 : f32
    %260 = vector.broadcast %cst_103 : f32 to vector<2x32xf32>
    %261 = arith.addf %260, %259 : vector<2x32xf32>
    %262 = arith.divf %260, %261 : vector<2x32xf32>
    %263 = vector.extract_strided_slice %244 {offsets = [0, 64], sizes = [2, 32], strides = [1, 1]} : vector<2x96xf32> to vector<2x32xf32>
    %264 = vector.extract_strided_slice %246 {offsets = [0, 64], sizes = [2, 32], strides = [1, 1]} : vector<2x96xf32> to vector<2x32xf32>
    %265 = arith.addf %264, %8 : vector<2x32xf32>
    %266 = arith.mulf %254, %265 : vector<2x32xf32>
    %267 = arith.addf %263, %266 : vector<2x32xf32>
    %268 = math.tanh %267 : vector<2x32xf32>
    %cst_104 = arith.constant 1.000000e+00 : f32
    %269 = vector.broadcast %cst_104 : f32 to vector<2x32xf32>
    %270 = arith.subf %269, %262 : vector<2x32xf32>
    %271 = arith.mulf %270, %268 : vector<2x32xf32>
    %272 = arith.mulf %262, %231 : vector<2x32xf32>
    %273 = arith.addf %271, %272 : vector<2x32xf32>
    %274 = arith.index_cast %c4_i32 : i32 to index
    %c0_105 = arith.constant 0 : index
    %c0_106 = arith.constant 0 : index
    %275 = vector.load %arg2[%274, %c0_105, %c0_106] : memref<8x2x32xbf16, #tpu.memory_space<vmem>>, vector<1x2x32xbf16>
    %276 = vector.shape_cast %275 : vector<1x2x32xbf16> to vector<2x32xbf16>
    %277 = arith.extf %276 : vector<2x32xbf16> to vector<2x32xf32>
    %278 = arith.addf %273, %277 : vector<2x32xf32>
    %279 = arith.truncf %278 : vector<2x32xf32> to vector<2x32xbf16>
    %280 = arith.index_cast %c4_i32 : i32 to index
    %c0_107 = arith.constant 0 : index
    %c0_108 = arith.constant 0 : index
    %281 = vector.load %arg7[%280, %c0_107, %c0_108] : memref<8x2x32xbf16, #tpu.memory_space<vmem>>, vector<1x2x32xbf16>
    %282 = vector.shape_cast %281 : vector<1x2x32xbf16> to vector<2x32xbf16>
    %283 = vector.shape_cast %279 : vector<2x32xbf16> to vector<1x2x32xbf16>
    tpu.vector_store %arg7[%280, %c0_107, %c0_108], %283 {strides = array<i32>} : memref<8x2x32xbf16, #tpu.memory_space<vmem>>, vector<1x2x32xbf16>,
    %c5_i32 = arith.constant 5 : i32
    %284 = arith.index_cast %c5_i32 : i32 to index
    %c0_109 = arith.constant 0 : index
    %c0_110 = arith.constant 0 : index
    %285 = vector.load %arg9[%284, %c0_109, %c0_110] : memref<8x2x96xf32, #tpu.memory_space<vmem>>, vector<1x2x96xf32>
    %286 = vector.shape_cast %285 : vector<1x2x96xf32> to vector<2x96xf32>
    %287 = arith.truncf %273 : vector<2x32xf32> to vector<2x32xbf16>
    %cst_111 = arith.constant dense<0.000000e+00> : vector<2x96xf32>
    %288 = tpu.matmul %287, %4, %cst_111 {dimension_numbers = #tpu.dot_dimension_numbers<[1], [0], [0], [1], [0, 0, 1, 1], [], []>} : vector<2x32xbf16>, vector<32x96xbf16>, vector<2x96xf32> -> vector<2x96xf32>
    %289 = vector.extract_strided_slice %286 {offsets = [0, 0], sizes = [2, 32], strides = [1, 1]} : vector<2x96xf32> to vector<2x32xf32>
    %290 = vector.extract_strided_slice %288 {offsets = [0, 0], sizes = [2, 32], strides = [1, 1]} : vector<2x96xf32> to vector<2x32xf32>
    %291 = arith.addf %289, %290 : vector<2x32xf32>
    %292 = arith.negf %291 : vector<2x32xf32>
    %293 = math.exp %292 : vector<2x32xf32>
    %cst_112 = arith.constant 1.000000e+00 : f32
    %294 = vector.broadcast %cst_112 : f32 to vector<2x32xf32>
    %295 = arith.addf %294, %293 : vector<2x32xf32>
    %296 = arith.divf %294, %295 : vector<2x32xf32>
    %297 = vector.extract_strided_slice %286 {offsets = [0, 32], sizes = [2, 32], strides = [1, 1]} : vector<2x96xf32> to vector<2x32xf32>
    %298 = vector.extract_strided_slice %288 {offsets = [0, 32], sizes = [2, 32], strides = [1, 1]} : vector<2x96xf32> to vector<2x32xf32>
    %299 = arith.addf %297, %298 : vector<2x32xf32>
    %300 = arith.negf %299 : vector<2x32xf32>
    %301 = math.exp %300 : vector<2x32xf32>
    %cst_113 = arith.constant 1.000000e+00 : f32
    %302 = vector.broadcast %cst_113 : f32 to vector<2x32xf32>
    %303 = arith.addf %302, %301 : vector<2x32xf32>
    %304 = arith.divf %302, %303 : vector<2x32xf32>
    %305 = vector.extract_strided_slice %286 {offsets = [0, 64], sizes = [2, 32], strides = [1, 1]} : vector<2x96xf32> to vector<2x32xf32>
    %306 = vector.extract_strided_slice %288 {offsets = [0, 64], sizes = [2, 32], strides = [1, 1]} : vector<2x96xf32> to vector<2x32xf32>
    %307 = arith.addf %306, %8 : vector<2x32xf32>
    %308 = arith.mulf %296, %307 : vector<2x32xf32>
    %309 = arith.addf %305, %308 : vector<2x32xf32>
    %310 = math.tanh %309 : vector<2x32xf32>
    %cst_114 = arith.constant 1.000000e+00 : f32
    %311 = vector.broadcast %cst_114 : f32 to vector<2x32xf32>
    %312 = arith.subf %311, %304 : vector<2x32xf32>
    %313 = arith.mulf %312, %310 : vector<2x32xf32>
    %314 = arith.mulf %304, %273 : vector<2x32xf32>
    %315 = arith.addf %313, %314 : vector<2x32xf32>
    %316 = arith.index_cast %c5_i32 : i32 to index
    %c0_115 = arith.constant 0 : index
    %c0_116 = arith.constant 0 : index
    %317 = vector.load %arg2[%316, %c0_115, %c0_116] : memref<8x2x32xbf16, #tpu.memory_space<vmem>>, vector<1x2x32xbf16>
    %318 = vector.shape_cast %317 : vector<1x2x32xbf16> to vector<2x32xbf16>
    %319 = arith.extf %318 : vector<2x32xbf16> to vector<2x32xf32>
    %320 = arith.addf %315, %319 : vector<2x32xf32>
    %321 = arith.truncf %320 : vector<2x32xf32> to vector<2x32xbf16>
    %322 = arith.index_cast %c5_i32 : i32 to index
    %c0_117 = arith.constant 0 : index
    %c0_118 = arith.constant 0 : index
    %323 = vector.load %arg7[%322, %c0_117, %c0_118] : memref<8x2x32xbf16, #tpu.memory_space<vmem>>, vector<1x2x32xbf16>
    %324 = vector.shape_cast %323 : vector<1x2x32xbf16> to vector<2x32xbf16>
    %325 = vector.shape_cast %321 : vector<2x32xbf16> to vector<1x2x32xbf16>
    tpu.vector_store %arg7[%322, %c0_117, %c0_118], %325 {strides = array<i32>} : memref<8x2x32xbf16, #tpu.memory_space<vmem>>, vector<1x2x32xbf16>,
    %c6_i32 = arith.constant 6 : i32
    %326 = arith.index_cast %c6_i32 : i32 to index
    %c0_119 = arith.constant 0 : index
    %c0_120 = arith.constant 0 : index
    %327 = vector.load %arg9[%326, %c0_119, %c0_120] : memref<8x2x96xf32, #tpu.memory_space<vmem>>, vector<1x2x96xf32>
    %328 = vector.shape_cast %327 : vector<1x2x96xf32> to vector<2x96xf32>
    %329 = arith.truncf %315 : vector<2x32xf32> to vector<2x32xbf16>
    %cst_121 = arith.constant dense<0.000000e+00> : vector<2x96xf32>
    %330 = tpu.matmul %329, %4, %cst_121 {dimension_numbers = #tpu.dot_dimension_numbers<[1], [0], [0], [1], [0, 0, 1, 1], [], []>} : vector<2x32xbf16>, vector<32x96xbf16>, vector<2x96xf32> -> vector<2x96xf32>
    %331 = vector.extract_strided_slice %328 {offsets = [0, 0], sizes = [2, 32], strides = [1, 1]} : vector<2x96xf32> to vector<2x32xf32>
    %332 = vector.extract_strided_slice %330 {offsets = [0, 0], sizes = [2, 32], strides = [1, 1]} : vector<2x96xf32> to vector<2x32xf32>
    %333 = arith.addf %331, %332 : vector<2x32xf32>
    %334 = arith.negf %333 : vector<2x32xf32>
    %335 = math.exp %334 : vector<2x32xf32>
    %cst_122 = arith.constant 1.000000e+00 : f32
    %336 = vector.broadcast %cst_122 : f32 to vector<2x32xf32>
    %337 = arith.addf %336, %335 : vector<2x32xf32>
    %338 = arith.divf %336, %337 : vector<2x32xf32>
    %339 = vector.extract_strided_slice %328 {offsets = [0, 32], sizes = [2, 32], strides = [1, 1]} : vector<2x96xf32> to vector<2x32xf32>
    %340 = vector.extract_strided_slice %330 {offsets = [0, 32], sizes = [2, 32], strides = [1, 1]} : vector<2x96xf32> to vector<2x32xf32>
    %341 = arith.addf %339, %340 : vector<2x32xf32>
    %342 = arith.negf %341 : vector<2x32xf32>
    %343 = math.exp %342 : vector<2x32xf32>
    %cst_123 = arith.constant 1.000000e+00 : f32
    %344 = vector.broadcast %cst_123 : f32 to vector<2x32xf32>
    %345 = arith.addf %344, %343 : vector<2x32xf32>
    %346 = arith.divf %344, %345 : vector<2x32xf32>
    %347 = vector.extract_strided_slice %328 {offsets = [0, 64], sizes = [2, 32], strides = [1, 1]} : vector<2x96xf32> to vector<2x32xf32>
    %348 = vector.extract_strided_slice %330 {offsets = [0, 64], sizes = [2, 32], strides = [1, 1]} : vector<2x96xf32> to vector<2x32xf32>
    %349 = arith.addf %348, %8 : vector<2x32xf32>
    %350 = arith.mulf %338, %349 : vector<2x32xf32>
    %351 = arith.addf %347, %350 : vector<2x32xf32>
    %352 = math.tanh %351 : vector<2x32xf32>
    %cst_124 = arith.constant 1.000000e+00 : f32
    %353 = vector.broadcast %cst_124 : f32 to vector<2x32xf32>
    %354 = arith.subf %353, %346 : vector<2x32xf32>
    %355 = arith.mulf %354, %352 : vector<2x32xf32>
    %356 = arith.mulf %346, %315 : vector<2x32xf32>
    %357 = arith.addf %355, %356 : vector<2x32xf32>
    %358 = arith.index_cast %c6_i32 : i32 to index
    %c0_125 = arith.constant 0 : index
    %c0_126 = arith.constant 0 : index
    %359 = vector.load %arg2[%358, %c0_125, %c0_126] : memref<8x2x32xbf16, #tpu.memory_space<vmem>>, vector<1x2x32xbf16>
    %360 = vector.shape_cast %359 : vector<1x2x32xbf16> to vector<2x32xbf16>
    %361 = arith.extf %360 : vector<2x32xbf16> to vector<2x32xf32>
    %362 = arith.addf %357, %361 : vector<2x32xf32>
    %363 = arith.truncf %362 : vector<2x32xf32> to vector<2x32xbf16>
    %364 = arith.index_cast %c6_i32 : i32 to index
    %c0_127 = arith.constant 0 : index
    %c0_128 = arith.constant 0 : index
    %365 = vector.load %arg7[%364, %c0_127, %c0_128] : memref<8x2x32xbf16, #tpu.memory_space<vmem>>, vector<1x2x32xbf16>
    %366 = vector.shape_cast %365 : vector<1x2x32xbf16> to vector<2x32xbf16>
    %367 = vector.shape_cast %363 : vector<2x32xbf16> to vector<1x2x32xbf16>
    tpu.vector_store %arg7[%364, %c0_127, %c0_128], %367 {strides = array<i32>} : memref<8x2x32xbf16, #tpu.memory_space<vmem>>, vector<1x2x32xbf16>,
    %c7_i32 = arith.constant 7 : i32
    %368 = arith.index_cast %c7_i32 : i32 to index
    %c0_129 = arith.constant 0 : index
    %c0_130 = arith.constant 0 : index
    %369 = vector.load %arg9[%368, %c0_129, %c0_130] : memref<8x2x96xf32, #tpu.memory_space<vmem>>, vector<1x2x96xf32>
    %370 = vector.shape_cast %369 : vector<1x2x96xf32> to vector<2x96xf32>
    %371 = arith.truncf %357 : vector<2x32xf32> to vector<2x32xbf16>
    %cst_131 = arith.constant dense<0.000000e+00> : vector<2x96xf32>
    %372 = tpu.matmul %371, %4, %cst_131 {dimension_numbers = #tpu.dot_dimension_numbers<[1], [0], [0], [1], [0, 0, 1, 1], [], []>} : vector<2x32xbf16>, vector<32x96xbf16>, vector<2x96xf32> -> vector<2x96xf32>
    %373 = vector.extract_strided_slice %370 {offsets = [0, 0], sizes = [2, 32], strides = [1, 1]} : vector<2x96xf32> to vector<2x32xf32>
    %374 = vector.extract_strided_slice %372 {offsets = [0, 0], sizes = [2, 32], strides = [1, 1]} : vector<2x96xf32> to vector<2x32xf32>
    %375 = arith.addf %373, %374 : vector<2x32xf32>
    %376 = arith.negf %375 : vector<2x32xf32>
    %377 = math.exp %376 : vector<2x32xf32>
    %cst_132 = arith.constant 1.000000e+00 : f32
    %378 = vector.broadcast %cst_132 : f32 to vector<2x32xf32>
    %379 = arith.addf %378, %377 : vector<2x32xf32>
    %380 = arith.divf %378, %379 : vector<2x32xf32>
    %381 = vector.extract_strided_slice %370 {offsets = [0, 32], sizes = [2, 32], strides = [1, 1]} : vector<2x96xf32> to vector<2x32xf32>
    %382 = vector.extract_strided_slice %372 {offsets = [0, 32], sizes = [2, 32], strides = [1, 1]} : vector<2x96xf32> to vector<2x32xf32>
    %383 = arith.addf %381, %382 : vector<2x32xf32>
    %384 = arith.negf %383 : vector<2x32xf32>
    %385 = math.exp %384 : vector<2x32xf32>
    %cst_133 = arith.constant 1.000000e+00 : f32
    %386 = vector.broadcast %cst_133 : f32 to vector<2x32xf32>
    %387 = arith.addf %386, %385 : vector<2x32xf32>
    %388 = arith.divf %386, %387 : vector<2x32xf32>
    %389 = vector.extract_strided_slice %370 {offsets = [0, 64], sizes = [2, 32], strides = [1, 1]} : vector<2x96xf32> to vector<2x32xf32>
    %390 = vector.extract_strided_slice %372 {offsets = [0, 64], sizes = [2, 32], strides = [1, 1]} : vector<2x96xf32> to vector<2x32xf32>
    %391 = arith.addf %390, %8 : vector<2x32xf32>
    %392 = arith.mulf %380, %391 : vector<2x32xf32>
    %393 = arith.addf %389, %392 : vector<2x32xf32>
    %394 = math.tanh %393 : vector<2x32xf32>
    %cst_134 = arith.constant 1.000000e+00 : f32
    %395 = vector.broadcast %cst_134 : f32 to vector<2x32xf32>
    %396 = arith.subf %395, %388 : vector<2x32xf32>
    %397 = arith.mulf %396, %394 : vector<2x32xf32>
    %398 = arith.mulf %388, %357 : vector<2x32xf32>
    %399 = arith.addf %397, %398 : vector<2x32xf32>
    %400 = arith.index_cast %c7_i32 : i32 to index
    %c0_135 = arith.constant 0 : index
    %c0_136 = arith.constant 0 : index
    %401 = vector.load %arg2[%400, %c0_135, %c0_136] : memref<8x2x32xbf16, #tpu.memory_space<vmem>>, vector<1x2x32xbf16>
    %402 = vector.shape_cast %401 : vector<1x2x32xbf16> to vector<2x32xbf16>
    %403 = arith.extf %402 : vector<2x32xbf16> to vector<2x32xf32>
    %404 = arith.addf %399, %403 : vector<2x32xf32>
    %405 = arith.truncf %404 : vector<2x32xf32> to vector<2x32xbf16>
    %406 = arith.index_cast %c7_i32 : i32 to index
    %c0_137 = arith.constant 0 : index
    %c0_138 = arith.constant 0 : index
    %407 = vector.load %arg7[%406, %c0_137, %c0_138] : memref<8x2x32xbf16, #tpu.memory_space<vmem>>, vector<1x2x32xbf16>
    %408 = vector.shape_cast %407 : vector<1x2x32xbf16> to vector<2x32xbf16>
    %409 = vector.shape_cast %405 : vector<2x32xbf16> to vector<1x2x32xbf16>
    tpu.vector_store %arg7[%406, %c0_137, %c0_138], %409 {strides = array<i32>} : memref<8x2x32xbf16, #tpu.memory_space<vmem>>, vector<1x2x32xbf16>,
    %c8_i32 = arith.constant 8 : i32
    %c0_139 = arith.constant 0 : index
    %c0_140 = arith.constant 0 : index
    %410 = vector.load %arg8[%c0_139, %c0_140] : memref<2x32xf32, #tpu.memory_space<vmem>>, vector<2x32xf32>
    tpu.vector_store %arg8[%c0_139, %c0_140], %399 {strides = array<i32>} : memref<2x32xf32, #tpu.memory_space<vmem>>, vector<2x32xf32>,
    return
  }
  func.func @transform_0(%arg0: i32, %arg1: i32) -> (i32, i32, i32) {
    %c0_i32 = arith.constant 0 : i32
    %c0_i32_0 = arith.constant 0 : i32
    return %arg1, %arg0, %c0_i32 : i32, i32, i32
  }
  func.func @transform_1(%arg0: i32, %arg1: i32) -> (i32, i32) {
    %c0_i32 = arith.constant 0 : i32
    %c0_i32_0 = arith.constant 0 : i32
    %c0_i32_1 = arith.constant 0 : i32
    return %c0_i32, %c0_i32_0 : i32, i32
  }
  func.func @transform_2(%arg0: i32, %arg1: i32) -> (i32, i32) {
    %c0_i32 = arith.constant 0 : i32
    %c0_i32_0 = arith.constant 0 : i32
    %c0_i32_1 = arith.constant 0 : i32
    return %c0_i32, %c0_i32_0 : i32, i32
  }
  func.func @transform_3(%arg0: i32, %arg1: i32) -> (i32, i32) {
    %c0_i32 = arith.constant 0 : i32
    %c0_i32_0 = arith.constant 0 : i32
    %c0_i32_1 = arith.constant 0 : i32
    return %c0_i32, %c0_i32_0 : i32, i32
  }
  func.func @transform_4(%arg0: i32, %arg1: i32) -> (i32, i32) {
    %c0_i32 = arith.constant 0 : i32
    %c0_i32_0 = arith.constant 0 : i32
    %c0_i32_1 = arith.constant 0 : i32
    return %c0_i32, %c0_i32_0 : i32, i32
  }
  func.func @transform_5(%arg0: i32, %arg1: i32) -> (i32, i32, i32) {
    %c0_i32 = arith.constant 0 : i32
    %c0_i32_0 = arith.constant 0 : i32
    return %arg1, %arg0, %c0_i32 : i32, i32, i32
  }
}

module attributes {stable_mosaic.version = 11 : i64} {
  func.func @_mlp_kernel(%arg0: i32, %arg1: memref<8x32xbf16, #tpu.memory_space<vmem>>, %arg2: memref<32x128xbf16, #tpu.memory_space<vmem>>, %arg3: memref<1x128xbf16, #tpu.memory_space<vmem>>, %arg4: memref<8x128xf32, #tpu.memory_space<vmem>>) attributes {dimension_semantics = [#tpu.dimension_semantics<parallel>], iteration_bounds = array<i64: 2>, scalar_prefetch = 0 : i64, scratch_operands = 0 : i64, tpu.core_type = #tpu.core_type<tc>, window_params = [{transform_indices = @transform_0, window_bounds = array<i64: 8, 32>}, {pipeline_mode = #tpu.pipeline_mode<synchronous>, transform_indices = @transform_1, window_bounds = array<i64: 32, 128>}, {pipeline_mode = #tpu.pipeline_mode<synchronous>, transform_indices = @transform_2, window_bounds = array<i64: 1, 128>}, {transform_indices = @transform_3, window_bounds = array<i64: 8, 128>}]} {
    %c0 = arith.constant 0 : index
    %c0_0 = arith.constant 0 : index
    %0 = vector.load %arg1[%c0, %c0_0] : memref<8x32xbf16, #tpu.memory_space<vmem>>, vector<8x32xbf16>
    %c0_1 = arith.constant 0 : index
    %c0_2 = arith.constant 0 : index
    %1 = vector.load %arg2[%c0_1, %c0_2] : memref<32x128xbf16, #tpu.memory_space<vmem>>, vector<32x128xbf16>
    %c0_3 = arith.constant 0 : index
    %c0_4 = arith.constant 0 : index
    %2 = vector.load %arg3[%c0_3, %c0_4] : memref<1x128xbf16, #tpu.memory_space<vmem>>, vector<1x128xbf16>
    %cst = arith.constant dense<0.000000e+00> : vector<8x128xf32>
    %3 = tpu.matmul %0, %1, %cst {dimension_numbers = #tpu.dot_dimension_numbers<[1], [0], [0], [1], [0, 0, 1, 1], [], []>} : vector<8x32xbf16>, vector<32x128xbf16>, vector<8x128xf32> -> vector<8x128xf32>
    %4 = arith.extf %2 : vector<1x128xbf16> to vector<1x128xf32>
    %5 = vector.broadcast %4 : vector<1x128xf32> to vector<8x128xf32>
    %6 = arith.addf %3, %5 : vector<8x128xf32>
    %c0_5 = arith.constant 0 : index
    %c0_6 = arith.constant 0 : index
    %7 = vector.load %arg4[%c0_5, %c0_6] : memref<8x128xf32, #tpu.memory_space<vmem>>, vector<8x128xf32>
    tpu.vector_store %arg4[%c0_5, %c0_6], %6 {strides = array<i32>} : memref<8x128xf32, #tpu.memory_space<vmem>>, vector<8x128xf32>,
    return
  }
  func.func @transform_0(%arg0: i32) -> (i32, i32) {
    %c0_i32 = arith.constant 0 : i32
    %c0_i32_0 = arith.constant 0 : i32
    return %arg0, %c0_i32 : i32, i32
  }
  func.func @transform_1(%arg0: i32) -> (i32, i32) {
    %c0_i32 = arith.constant 0 : i32
    %c0_i32_0 = arith.constant 0 : i32
    %c0_i32_1 = arith.constant 0 : i32
    return %c0_i32, %c0_i32_0 : i32, i32
  }
  func.func @transform_2(%arg0: i32) -> (i32, i32) {
    %c0_i32 = arith.constant 0 : i32
    %c0_i32_0 = arith.constant 0 : i32
    %c0_i32_1 = arith.constant 0 : i32
    return %c0_i32, %c0_i32_0 : i32, i32
  }
  func.func @transform_3(%arg0: i32) -> (i32, i32) {
    %c0_i32 = arith.constant 0 : i32
    %c0_i32_0 = arith.constant 0 : i32
    return %arg0, %c0_i32 : i32, i32
  }
}

</mosaic_0001>

<llo_original>
// kernel: apc_forward.5
$region0: #{apc_forward.5}
  #allocation0 [shape = 'u32[]', space=smem, size = 0x4, offset = 0x4, fixed_abs, tag = 'smem constant byte address 0x4 - core index']
  #allocation1 [shape = 'u32[144,128]{1,0:T(1,128)}', space=vmem, size = 0x12000, scoped, tag = 'internal scratch']
  %s0 = inlined_call_operand.vmem [shape: bf16[16,32], index: 0, kind: input, shape index: {}]
  %s1 = inlined_call_operand.vmem [shape: bf16[32,32], index: 1, kind: input, shape index: {}]
  %s2 = inlined_call_operand.vmem [shape: bf16[1,32], index: 2, kind: input, shape index: {}]
  %s3 = inlined_call_operand.vmem [shape: bf16[32,32], index: 3, kind: input, shape index: {}]
  %s4 = inlined_call_operand.vmem [shape: bf16[1,32], index: 4, kind: input, shape index: {}]
  %s5 = inlined_call_operand.vmem [shape: bf16[16,32], index: 5, kind: output, shape index: {}]
  %s6 = sld [smem:[#allocation0]]
  $region53: #{apc_forward.5} parent=0
    _
  %s8 = ssub.s32 1, %s6
  %s9 = scalar_select 0, %s8, %s6
  loop: start=0, step=1, limit=4
  $region2: #{apc_forward.5} parent=0 // loop_pre_header
    _
  $region3: #{apc_forward.5} parent=0 // loop_header
    %s11 = sphi 0, %s15
    %p12 = scmp.ge.s32.totalorder %s11, 4
    %s21 = sphi 0, %s23
    %s24 = sphi 0, %s21
    %s25 = sphi 0, %s24
    %s41 = sphi 0, %s25
    %s45 = sphi 0, %s45
    %s47 = sphi 0, %s45
    %s48 = sphi 0, %s47
    %s62 = sphi 0, %s48
    %s66 = sphi 0, %s66
    %s68 = sphi 0, %s66
    %s69 = sphi 0, %s68
    %s83 = sphi 0, %s69
    %s87 = sphi 0, %s87
    %s89 = sphi 0, %s87
    %s90 = sphi 0, %s89
    %s104 = sphi 0, %s90
    %s108 = sphi 0, %s108
    %s110 = sphi 0, %s108
    %s111 = sphi 0, %s110
    %s125 = sphi 0, %s111
    %s131 = sphi 0, %s133
    %s134 = sphi 0, %s131
    %s135 = sphi 0, %s134
    %s151 = sphi 0, %s135
  $region4: #{apc_forward.5} parent=0 // loop_header_branch
    %14 = sbr.rel (%p12) target = $region8
  $region5: #{apc_forward.5} parent=0 // loop_body
    %s16 = ssub.s32 %s11, 1
    %s17 = ssub.s32 %s11, 2
    %s18 = sadd.s32 %s11, 1
    %s19 = ssub.s32 %s11, %s18
    %p20 = scmp.eq.s32.totalorder %s19, 0
    %s22 = sadd.s32 %s21, 1
    %s23 = scalar_select %p20, %s21, %s22
    %p26 = pneg %p20
    %p27 = scmp.eq.s32.totalorder %s11, 1
    %p28 = por %p26, %p27
    %p29 = scmp.ne.s32.totalorder %s21, %s24
    %p30 = scmp.eq.s32.totalorder %s11, 0
    %p31 = por %p29, %p30
    %p32 = scmp.ne.s32.totalorder %s21, %s24
    %p33 = scmp.eq.s32.totalorder %s16, 1
    %p34 = por %p32, %p33
    %p35 = scmp.ne.s32.totalorder %s24, %s25
    %p36 = scmp.eq.s32.totalorder %s16, 0
    %p37 = por %p35, %p36
    %p38 = scmp.ne.s32.totalorder %s24, %s25
    %p39 = scmp.eq.s32.totalorder %s17, 1
    %p40 = por %p38, %p39
    %p42 = scmp.ne.s32.totalorder %s25, %s41
    %p43 = scmp.eq.s32.totalorder %s17, 0
    %p44 = por %p42, %p43
    %s46 = sadd.s32 %s45, 1
    %p49 = scmp.eq.s32.totalorder %s11, 1
    %p50 = scmp.ne.s32.totalorder %s45, %s47
    %p51 = scmp.eq.s32.totalorder %s11, 0
    %p52 = por %p50, %p51
    %p53 = scmp.ne.s32.totalorder %s45, %s47
    %p54 = scmp.eq.s32.totalorder %s16, 1
    %p55 = por %p53, %p54
    %p56 = scmp.ne.s32.totalorder %s47, %s48
    %p57 = scmp.eq.s32.totalorder %s16, 0
    %p58 = por %p56, %p57
    %p59 = scmp.ne.s32.totalorder %s47, %s48
    %p60 = scmp.eq.s32.totalorder %s17, 1
    %p61 = por %p59, %p60
    %p63 = scmp.ne.s32.totalorder %s48, %s62
    %p64 = scmp.eq.s32.totalorder %s17, 0
    %p65 = por %p63, %p64
    %s67 = sadd.s32 %s66, 1
    %p70 = scmp.eq.s32.totalorder %s11, 1
    %p71 = scmp.ne.s32.totalorder %s66, %s68
    %p72 = scmp.eq.s32.totalorder %s11, 0
    %p73 = por %p71, %p72
    %p74 = scmp.ne.s32.totalorder %s66, %s68
    %p75 = scmp.eq.s32.totalorder %s16, 1
    %p76 = por %p74, %p75
    %p77 = scmp.ne.s32.totalorder %s68, %s69
    %p78 = scmp.eq.s32.totalorder %s16, 0
    %p79 = por %p77, %p78
    %p80 = scmp.ne.s32.totalorder %s68, %s69
    %p81 = scmp.eq.s32.totalorder %s17, 1
    %p82 = por %p80, %p81
    %p84 = scmp.ne.s32.totalorder %s69, %s83
    %p85 = scmp.eq.s32.totalorder %s17, 0
    %p86 = por %p84, %p85
    %s88 = sadd.s32 %s87, 1
    %p91 = scmp.eq.s32.totalorder %s11, 1
    %p92 = scmp.ne.s32.totalorder %s87, %s89
    %p93 = scmp.eq.s32.totalorder %s11, 0
    %p94 = por %p92, %p93
    %p95 = scmp.ne.s32.totalorder %s87, %s89
    %p96 = scmp.eq.s32.totalorder %s16, 1
    %p97 = por %p95, %p96
    %p98 = scmp.ne.s32.totalorder %s89, %s90
    %p99 = scmp.eq.s32.totalorder %s16, 0
    %p100 = por %p98, %p99
    %p101 = scmp.ne.s32.totalorder %s89, %s90
    %p102 = scmp.eq.s32.totalorder %s17, 1
    %p103 = por %p101, %p102
    %p105 = scmp.ne.s32.totalorder %s90, %s104
    %p106 = scmp.eq.s32.totalorder %s17, 0
    %p107 = por %p105, %p106
    %s109 = sadd.s32 %s108, 1
    %p112 = scmp.eq.s32.totalorder %s11, 1
    %p113 = scmp.ne.s32.totalorder %s108, %s110
    %p114 = scmp.eq.s32.totalorder %s11, 0
    %p115 = por %p113, %p114
    %p116 = scmp.ne.s32.totalorder %s108, %s110
    %p117 = scmp.eq.s32.totalorder %s16, 1
    %p118 = por %p116, %p117
    %p119 = scmp.ne.s32.totalorder %s110, %s111
    %p120 = scmp.eq.s32.totalorder %s16, 0
    %p121 = por %p119, %p120
    %p122 = scmp.ne.s32.totalorder %s110, %s111
    %p123 = scmp.eq.s32.totalorder %s17, 1
    %p124 = por %p122, %p123
    %p126 = scmp.ne.s32.totalorder %s111, %s125
    %p127 = scmp.eq.s32.totalorder %s17, 0
    %p128 = por %p126, %p127
    %s129 = ssub.s32 %s11, %s18
    %p130 = scmp.eq.s32.totalorder %s129, 0
    %s132 = sadd.s32 %s131, 1
    %s133 = scalar_select %p130, %s131, %s132
    %p136 = pneg %p130
    %p137 = scmp.eq.s32.totalorder %s11, 1
    %p138 = por %p136, %p137
    %p139 = scmp.ne.s32.totalorder %s131, %s134
    %p140 = scmp.eq.s32.totalorder %s11, 0
    %p141 = por %p139, %p140
    %p142 = scmp.ne.s32.totalorder %s131, %s134
    %p143 = scmp.eq.s32.totalorder %s16, 1
    %p144 = por %p142, %p143
    %p145 = scmp.ne.s32.totalorder %s134, %s135
    %p146 = scmp.eq.s32.totalorder %s16, 0
    %p147 = por %p145, %p146
    %p148 = scmp.ne.s32.totalorder %s134, %s135
    %p149 = scmp.eq.s32.totalorder %s17, 1
    %p150 = por %p148, %p149
    %p152 = scmp.ne.s32.totalorder %s135, %s151
    %p153 = scmp.eq.s32.totalorder %s17, 0
    %p154 = por %p152, %p153
    %p155 = scmp.le.s32.totalorder 1, %s11
    %p156 = scmp.lt.s32.totalorder %s11, 3
    %p157 = pnand %p155, %p156
    %p158 = pneg %p157
    // Predicated region
    $region9: #{apc_forward.5} parent=5 // pred_check
      _
    $region10: #{apc_forward.5} parent=5 // pred_check_branch
      %160 = sbr.rel (%p157) target = $region12
    $region11: #{apc_forward.5} parent=5 // pred_region
      %s161 = ssub.s32 %s11, 1
      // Predicated region
      $region13: #{apc_forward.5} parent=11 // pred_check
        %p162 = pneg %p58
      $region14: #{apc_forward.5} parent=11 // pred_check_branch
        %164 = sbr.rel (%p162) target = $region16
      $region15: #{apc_forward.5} parent=11 // pred_region
        _
      $region16: #{apc_forward.5} parent=11 // pred_fallthru
        _
      // Predicated region
      $region17: #{apc_forward.5} parent=11 // pred_check
        %p165 = pneg %p79
      $region18: #{apc_forward.5} parent=11 // pred_check_branch
        %167 = sbr.rel (%p165) target = $region20
      $region19: #{apc_forward.5} parent=11 // pred_region
        _
      $region20: #{apc_forward.5} parent=11 // pred_fallthru
        _
      // Predicated region
      $region21: #{apc_forward.5} parent=11 // pred_check
        %p168 = pneg %p100
      $region22: #{apc_forward.5} parent=11 // pred_check_branch
        %170 = sbr.rel (%p168) target = $region24
      $region23: #{apc_forward.5} parent=11 // pred_region
        _
      $region24: #{apc_forward.5} parent=11 // pred_fallthru
        _
      // Predicated region
      $region25: #{apc_forward.5} parent=11 // pred_check
        %p171 = pneg %p121
      $region26: #{apc_forward.5} parent=11 // pred_check_branch
        %173 = sbr.rel (%p171) target = $region28
      $region27: #{apc_forward.5} parent=11 // pred_region
        _
      $region28: #{apc_forward.5} parent=11 // pred_fallthru
        _
    $region12: #{apc_forward.5} parent=5 // pred_fallthru
      _
    %p174 = scmp.lt.s32.totalorder %s11, 2
    // Predicated region
    $region29: #{apc_forward.5} parent=5 // pred_check
      %p175 = pneg %p174
    $region30: #{apc_forward.5} parent=5 // pred_check_branch
      %177 = sbr.rel (%p175) target = $region32
    $region31: #{apc_forward.5} parent=5 // pred_region
      // Predicated region
      $region33: #{apc_forward.5} parent=31 // pred_check
        %p178 = pneg %p31
      $region34: #{apc_forward.5} parent=31 // pred_check_branch
        %180 = sbr.rel (%p178) target = $region36
      $region35: #{apc_forward.5} parent=31 // pred_region
        %p181 = scmp.lt.s32.totalorder %s11, 1
        %s182 = scalar_select %p181, %s11, 1
        %s183 = smul.addr %s182, 4
        %s184 = scalar_lea.vmem %s0, %s183
      $region36: #{apc_forward.5} parent=31 // pred_fallthru
        _
    $region32: #{apc_forward.5} parent=5 // pred_fallthru
      _
    %p185 = scmp.le.s32.totalorder 1, %s11
    %p186 = scmp.lt.s32.totalorder %s11, 3
    %p187 = pnand %p185, %p186
    %p188 = pneg %p187
    // Predicated region
    $region37: #{apc_forward.5} parent=5 // pred_check
      _
    $region38: #{apc_forward.5} parent=5 // pred_check_branch
      %190 = sbr.rel (%p187) target = $region40
    $region39: #{apc_forward.5} parent=5 // pred_region
      %s191 = ssub.s32 %s11, 1
      %p192 = scmp.lt.s32.totalorder %s16, 1
      %s193 = scalar_select %p192, %s16, 1
      %s194 = smul.addr %s193, 4
      %s195 = scalar_lea.vmem %s0, %s194
      %p196 = pneg %p37
      %p197 = pneg %p34
      %p198 = pneg %p58
      %p199 = pneg %p55
      %p200 = pneg %p79
      %p201 = pneg %p76
      %p202 = pneg %p100
      %p203 = pneg %p97
      %p204 = pneg %p121
      %p205 = pneg %p118
      %p206 = pneg %p147
      %p207 = pneg %p144
      %p208 = scmp.lt.s32.totalorder %s16, 1
      %s209 = scalar_select %p208, %s16, 1
      %s210 = smul.addr %s209, 4
      %s211 = scalar_lea.vmem %s5, %s210
      %p212 = scmp.lt.s32.totalorder %s16, 1
      %s213 = scalar_select %p212, %s16, 1
      %s214 = smul.addr %s213, 4
      %s215 = scalar_lea.vmem %s0, %s214
      %p216 = scmp.lt.s32.totalorder %s16, 1
      %s217 = scalar_select %p216, %s16, 1
      %s218 = smul.addr %s217, 4
      %s219 = scalar_lea.vmem %s5, %s218
      %v221 = vld [vmem:[%s215] sm:$0xf]
      %v222 = vld [vmem:[%s1] sm:$0xf]
      %v223 = vld [vmem:[%s1 + $0x4] sm:$0xf]
      %v224 = vld [vmem:[%s1 + $0x8] sm:$0xf]
      %v225 = vld [vmem:[%s1 + $0xc] sm:$0xf]
      %v226 = vld [vmem:[%s2] sm:$0x1]
      %v227 = vunpack.c.l.bf16 %v226
      %v228 = vlaneseq
      %v229 = vshrl.u32 %v228, 7
      %v230 = vsub.s32 0, %v229
      %v231 = vrot.slane %v227, %v230
      %v236 = vunpack.c.l.b16 %v222
      %v237 = vunpack.c.l.b16 %v223
      %v238 = vunpack.c.l.b16 %v224
      %v239 = vunpack.c.l.b16 %v225
      %v240 = vpack.c.b16 %v237, %v236
      %v241 = vpack.c.b16 %v239, %v238
      %vm244 = vcmask 261120
      %v246 = vsel %vm244, %v221, 0
      %248 = vmatprep.subr.bf16.mxu0 0
      %249 = vmatpush1.bf16.msra.mxu0 %v240
      %250 = vmatprep.subr.bf16.mxu0 0
      %251 = vmatpush1.bf16.msra.mxu0 %v241
      %252 = vmatprep.subr.bf16.mxu0 0
      %253 = vmatpush1.bf16.msra.mxu0 0
      %254 = vmatprep.subr.bf16.mxu0 0
      %255 = vmatpush1.bf16.msra.mxu0 0
      %256 = vmatprep.subr.bf16.mxu0 0
      %257 = vmatpush1.bf16.msra.mxu0 0
      %258 = vmatprep.subr.bf16.mxu0 0
      %259 = vmatpush1.bf16.msra.mxu0 0
      %260 = vmatprep.subr.bf16.mxu0 0
      %261 = vmatpush1.bf16.msra.mxu0 0
      %262 = vmatprep.subr.bf16.mxu0 0
      %263 = vmatpush1.bf16.msra.mxu0 0
      %264 = vmatprep.subr.bf16.mxu0 0
      %265 = vmatpush1.bf16.msra.mxu0 0
      %266 = vmatprep.subr.bf16.mxu0 0
      %267 = vmatpush1.bf16.msra.mxu0 0
      %268 = vmatprep.subr.bf16.mxu0 0
      %269 = vmatpush1.bf16.msra.mxu0 0
      %270 = vmatprep.subr.bf16.mxu0 0
      %271 = vmatpush1.bf16.msra.mxu0 0
      %272 = vmatprep.subr.bf16.mxu0 0
      %273 = vmatpush1.bf16.msra.mxu0 0
      %274 = vmatprep.subr.bf16.mxu0 0
      %275 = vmatpush1.bf16.msra.mxu0 0
      %276 = vmatprep.subr.bf16.mxu0 0
      %277 = vmatpush1.bf16.msra.mxu0 0
      %278 = vmatprep.subr.bf16.mxu0 0
      %279 = vmatpush1.bf16.msra.mxu0 0
      %280 = vmatprep.mubr.bf16.mxu0 0
      %281 = vmatmul.mubr.bf16.gmra.mrb[0].mxu0 %v246
      %v282 = vpop.f32.mrb[0].mxu0
      %v283 = vadd.f32 %v231, %v282
      %v284 = vpop.f32.mrb[0].mxu0
      %v285 = vpop.f32.mrb[0].mxu0
      %v286 = vpop.f32.mrb[0].mxu0
      %287 = vdwg.mxu0
      %v288 = vmax.f32 %v283, 0.0
      %v289 = vld [vmem:[%s3] sm:$0xf]
      %v290 = vld [vmem:[%s3 + $0x4] sm:$0xf]
      %v291 = vld [vmem:[%s3 + $0x8] sm:$0xf]
      %v292 = vld [vmem:[%s3 + $0xc] sm:$0xf]
      %v293 = vld [vmem:[%s4] sm:$0x1]
      %v294 = vpack.c.bf16 %v288, %v288
      %v295 = vunpack.c.l.bf16 %v293
      %v296 = vlaneseq
      %v297 = vshrl.u32 %v296, 7
      %v298 = vsub.s32 0, %v297
      %v299 = vrot.slane %v295, %v298
      %v304 = vunpack.c.l.b16 %v289
      %v305 = vunpack.c.l.b16 %v290
      %v306 = vunpack.c.l.b16 %v291
      %v307 = vunpack.c.l.b16 %v292
      %v308 = vpack.c.b16 %v305, %v304
      %v309 = vpack.c.b16 %v307, %v306
      %v313 = vsel %vm244, %v294, 0
      %315 = vmatprep.subr.bf16.mxu0 0
      %316 = vmatpush1.bf16.msra.mxu0 %v308
      %317 = vmatprep.subr.bf16.mxu0 0
      %318 = vmatpush1.bf16.msra.mxu0 %v309
      %319 = vmatprep.subr.bf16.mxu0 0
      %320 = vmatpush1.bf16.msra.mxu0 0
      %321 = vmatprep.subr.bf16.mxu0 0
      %322 = vmatpush1.bf16.msra.mxu0 0
      %323 = vmatprep.subr.bf16.mxu0 0
      %324 = vmatpush1.bf16.msra.mxu0 0
      %325 = vmatprep.subr.bf16.mxu0 0
      %326 = vmatpush1.bf16.msra.mxu0 0
      %327 = vmatprep.subr.bf16.mxu0 0
      %328 = vmatpush1.bf16.msra.mxu0 0
      %329 = vmatprep.subr.bf16.mxu0 0
      %330 = vmatpush1.bf16.msra.mxu0 0
      %331 = vmatprep.subr.bf16.mxu0 0
      %332 = vmatpush1.bf16.msra.mxu0 0
      %333 = vmatprep.subr.bf16.mxu0 0
      %334 = vmatpush1.bf16.msra.mxu0 0
      %335 = vmatprep.subr.bf16.mxu0 0
      %336 = vmatpush1.bf16.msra.mxu0 0
      %337 = vmatprep.subr.bf16.mxu0 0
      %338 = vmatpush1.bf16.msra.mxu0 0
      %339 = vmatprep.subr.bf16.mxu0 0
      %340 = vmatpush1.bf16.msra.mxu0 0
      %341 = vmatprep.subr.bf16.mxu0 0
      %342 = vmatpush1.bf16.msra.mxu0 0
      %343 = vmatprep.subr.bf16.mxu0 0
      %344 = vmatpush1.bf16.msra.mxu0 0
      %345 = vmatprep.subr.bf16.mxu0 0
      %346 = vmatpush1.bf16.msra.mxu0 0
      %347 = vmatprep.mubr.bf16.mxu0 0
      %348 = vmatmul.mubr.bf16.gmra.mrb[0].mxu0 %v313
      %v349 = vpop.f32.mrb[0].mxu0
      %v350 = vadd.f32 %v299, %v349
      %v351 = vpop.f32.mrb[0].mxu0
      %v352 = vpop.f32.mrb[0].mxu0
      %v353 = vpop.f32.mrb[0].mxu0
      %354 = vdwg.mxu0
      %v355 = vmax.f32 %v350, 0.0
      %v356 = vpack.c.bf16 %v355, %v355
      %vm357 = vcmask 257024
      %358 = vst.msk [vmem:[%s219] sm:$0xf] %vm357, %v356
      %p359 = scmp.lt.s32.totalorder %s16, 1
      %s360 = scalar_select %p359, %s16, 1
      %s361 = smul.addr %s360, 4
      %s362 = scalar_lea.vmem %s5, %s361
      // Predicated region
      $region41: #{apc_forward.5} parent=39 // pred_check
        %p363 = pneg %p144
      $region42: #{apc_forward.5} parent=39 // pred_check_branch
        %365 = sbr.rel (%p363) target = $region44
      $region43: #{apc_forward.5} parent=39 // pred_region
        _
      $region44: #{apc_forward.5} parent=39 // pred_fallthru
        _
    $region40: #{apc_forward.5} parent=5 // pred_fallthru
      _
    %p366 = scmp.le.s32.totalorder 2, %s11
    // Predicated region
    $region45: #{apc_forward.5} parent=5 // pred_check
      %p367 = pneg %p366
    $region46: #{apc_forward.5} parent=5 // pred_check_branch
      %369 = sbr.rel (%p367) target = $region48
    $region47: #{apc_forward.5} parent=5 // pred_region
      %s370 = ssub.s32 %s11, 2
      // Predicated region
      $region49: #{apc_forward.5} parent=47 // pred_check
        %p371 = pneg %p150
      $region50: #{apc_forward.5} parent=47 // pred_check_branch
        %373 = sbr.rel (%p371) target = $region52
      $region51: #{apc_forward.5} parent=47 // pred_region
        %p374 = scmp.lt.s32.totalorder %s17, 1
        %s375 = scalar_select %p374, %s17, 1
        %s376 = smul.addr %s375, 4
        %s377 = scalar_lea.vmem %s5, %s376
      $region52: #{apc_forward.5} parent=47 // pred_fallthru
        _
    $region48: #{apc_forward.5} parent=5 // pred_fallthru
      _
  $region6: #{apc_forward.5} parent=0 // loop_footer
    %s15 = sadd.s32 1, %s11
  $region7: #{apc_forward.5} parent=0 // loop_footer_branch
    %10 = sbr.rel target = $region3
  $region8: #{apc_forward.5} parent=0 // loop_exit
    _

// kernel: apc_forward.9
$region0: #{apc_forward.9}
  #allocation0 [shape = 'u32[]', space=smem, size = 0x4, offset = 0x4, fixed_abs, tag = 'smem constant byte address 0x4 - core index']
  #allocation1 [shape = 'u32[144,128]{1,0:T(1,128)}', space=vmem, size = 0x12000, scoped, tag = 'internal scratch']
  %s0 = inlined_call_operand.vmem [shape: bf16[16,32], index: 0, kind: input, shape index: {}]
  %s1 = inlined_call_operand.vmem [shape: bf16[32,128], index: 1, kind: input, shape index: {}]
  %s2 = inlined_call_operand.vmem [shape: bf16[1,128], index: 2, kind: input, shape index: {}]
  %s3 = inlined_call_operand.vmem [shape: f32[16,128], index: 3, kind: output, shape index: {}]
  %s4 = sld [smem:[#allocation0]]
  $region45: #{apc_forward.9} parent=0
    _
  %s6 = ssub.s32 1, %s4
  %s7 = scalar_select 0, %s6, %s4
  loop: start=0, step=1, limit=4
  $region2: #{apc_forward.9} parent=0 // loop_pre_header
    _
  $region3: #{apc_forward.9} parent=0 // loop_header
    %s9 = sphi 0, %s13
    %p10 = scmp.ge.s32.totalorder %s9, 4
    %s19 = sphi 0, %s21
    %s22 = sphi 0, %s19
    %s23 = sphi 0, %s22
    %s39 = sphi 0, %s23
    %s43 = sphi 0, %s43
    %s45 = sphi 0, %s43
    %s46 = sphi 0, %s45
    %s60 = sphi 0, %s46
    %s64 = sphi 0, %s64
    %s66 = sphi 0, %s64
    %s67 = sphi 0, %s66
    %s81 = sphi 0, %s67
    %s87 = sphi 0, %s89
    %s90 = sphi 0, %s87
    %s91 = sphi 0, %s90
    %s107 = sphi 0, %s91
  $region4: #{apc_forward.9} parent=0 // loop_header_branch
    %12 = sbr.rel (%p10) target = $region8
  $region5: #{apc_forward.9} parent=0 // loop_body
    %s14 = ssub.s32 %s9, 1
    %s15 = ssub.s32 %s9, 2
    %s16 = sadd.s32 %s9, 1
    %s17 = ssub.s32 %s9, %s16
    %p18 = scmp.eq.s32.totalorder %s17, 0
    %s20 = sadd.s32 %s19, 1
    %s21 = scalar_select %p18, %s19, %s20
    %p24 = pneg %p18
    %p25 = scmp.eq.s32.totalorder %s9, 1
    %p26 = por %p24, %p25
    %p27 = scmp.ne.s32.totalorder %s19, %s22
    %p28 = scmp.eq.s32.totalorder %s9, 0
    %p29 = por %p27, %p28
    %p30 = scmp.ne.s32.totalorder %s19, %s22
    %p31 = scmp.eq.s32.totalorder %s14, 1
    %p32 = por %p30, %p31
    %p33 = scmp.ne.s32.totalorder %s22, %s23
    %p34 = scmp.eq.s32.totalorder %s14, 0
    %p35 = por %p33, %p34
    %p36 = scmp.ne.s32.totalorder %s22, %s23
    %p37 = scmp.eq.s32.totalorder %s15, 1
    %p38 = por %p36, %p37
    %p40 = scmp.ne.s32.totalorder %s23, %s39
    %p41 = scmp.eq.s32.totalorder %s15, 0
    %p42 = por %p40, %p41
    %s44 = sadd.s32 %s43, 1
    %p47 = scmp.eq.s32.totalorder %s9, 1
    %p48 = scmp.ne.s32.totalorder %s43, %s45
    %p49 = scmp.eq.s32.totalorder %s9, 0
    %p50 = por %p48, %p49
    %p51 = scmp.ne.s32.totalorder %s43, %s45
    %p52 = scmp.eq.s32.totalorder %s14, 1
    %p53 = por %p51, %p52
    %p54 = scmp.ne.s32.totalorder %s45, %s46
    %p55 = scmp.eq.s32.totalorder %s14, 0
    %p56 = por %p54, %p55
    %p57 = scmp.ne.s32.totalorder %s45, %s46
    %p58 = scmp.eq.s32.totalorder %s15, 1
    %p59 = por %p57, %p58
    %p61 = scmp.ne.s32.totalorder %s46, %s60
    %p62 = scmp.eq.s32.totalorder %s15, 0
    %p63 = por %p61, %p62
    %s65 = sadd.s32 %s64, 1
    %p68 = scmp.eq.s32.totalorder %s9, 1
    %p69 = scmp.ne.s32.totalorder %s64, %s66
    %p70 = scmp.eq.s32.totalorder %s9, 0
    %p71 = por %p69, %p70
    %p72 = scmp.ne.s32.totalorder %s64, %s66
    %p73 = scmp.eq.s32.totalorder %s14, 1
    %p74 = por %p72, %p73
    %p75 = scmp.ne.s32.totalorder %s66, %s67
    %p76 = scmp.eq.s32.totalorder %s14, 0
    %p77 = por %p75, %p76
    %p78 = scmp.ne.s32.totalorder %s66, %s67
    %p79 = scmp.eq.s32.totalorder %s15, 1
    %p80 = por %p78, %p79
    %p82 = scmp.ne.s32.totalorder %s67, %s81
    %p83 = scmp.eq.s32.totalorder %s15, 0
    %p84 = por %p82, %p83
    %s85 = ssub.s32 %s9, %s16
    %p86 = scmp.eq.s32.totalorder %s85, 0
    %s88 = sadd.s32 %s87, 1
    %s89 = scalar_select %p86, %s87, %s88
    %p92 = pneg %p86
    %p93 = scmp.eq.s32.totalorder %s9, 1
    %p94 = por %p92, %p93
    %p95 = scmp.ne.s32.totalorder %s87, %s90
    %p96 = scmp.eq.s32.totalorder %s9, 0
    %p97 = por %p95, %p96
    %p98 = scmp.ne.s32.totalorder %s87, %s90
    %p99 = scmp.eq.s32.totalorder %s14, 1
    %p100 = por %p98, %p99
    %p101 = scmp.ne.s32.totalorder %s90, %s91
    %p102 = scmp.eq.s32.totalorder %s14, 0
    %p103 = por %p101, %p102
    %p104 = scmp.ne.s32.totalorder %s90, %s91
    %p105 = scmp.eq.s32.totalorder %s15, 1
    %p106 = por %p104, %p105
    %p108 = scmp.ne.s32.totalorder %s91, %s107
    %p109 = scmp.eq.s32.totalorder %s15, 0
    %p110 = por %p108, %p109
    %p111 = scmp.le.s32.totalorder 1, %s9
    %p112 = scmp.lt.s32.totalorder %s9, 3
    %p113 = pnand %p111, %p112
    %p114 = pneg %p113
    // Predicated region
    $region9: #{apc_forward.9} parent=5 // pred_check
      _
    $region10: #{apc_forward.9} parent=5 // pred_check_branch
      %116 = sbr.rel (%p113) target = $region12
    $region11: #{apc_forward.9} parent=5 // pred_region
      %s117 = ssub.s32 %s9, 1
      // Predicated region
      $region13: #{apc_forward.9} parent=11 // pred_check
        %p118 = pneg %p56
      $region14: #{apc_forward.9} parent=11 // pred_check_branch
        %120 = sbr.rel (%p118) target = $region16
      $region15: #{apc_forward.9} parent=11 // pred_region
        _
      $region16: #{apc_forward.9} parent=11 // pred_fallthru
        _
      // Predicated region
      $region17: #{apc_forward.9} parent=11 // pred_check
        %p121 = pneg %p77
      $region18: #{apc_forward.9} parent=11 // pred_check_branch
        %123 = sbr.rel (%p121) target = $region20
      $region19: #{apc_forward.9} parent=11 // pred_region
        _
      $region20: #{apc_forward.9} parent=11 // pred_fallthru
        _
    $region12: #{apc_forward.9} parent=5 // pred_fallthru
      _
    %p124 = scmp.lt.s32.totalorder %s9, 2
    // Predicated region
    $region21: #{apc_forward.9} parent=5 // pred_check
      %p125 = pneg %p124
    $region22: #{apc_forward.9} parent=5 // pred_check_branch
      %127 = sbr.rel (%p125) target = $region24
    $region23: #{apc_forward.9} parent=5 // pred_region
      // Predicated region
      $region25: #{apc_forward.9} parent=23 // pred_check
        %p128 = pneg %p29
      $region26: #{apc_forward.9} parent=23 // pred_check_branch
        %130 = sbr.rel (%p128) target = $region28
      $region27: #{apc_forward.9} parent=23 // pred_region
        %p131 = scmp.lt.s32.totalorder %s9, 1
        %s132 = scalar_select %p131, %s9, 1
        %s133 = smul.addr %s132, 4
        %s134 = scalar_lea.vmem %s0, %s133
      $region28: #{apc_forward.9} parent=23 // pred_fallthru
        _
    $region24: #{apc_forward.9} parent=5 // pred_fallthru
      _
    %p135 = scmp.le.s32.totalorder 1, %s9
    %p136 = scmp.lt.s32.totalorder %s9, 3
    %p137 = pnand %p135, %p136
    %p138 = pneg %p137
    // Predicated region
    $region29: #{apc_forward.9} parent=5 // pred_check
      _
    $region30: #{apc_forward.9} parent=5 // pred_check_branch
      %140 = sbr.rel (%p137) target = $region32
    $region31: #{apc_forward.9} parent=5 // pred_region
      %s141 = ssub.s32 %s9, 1
      %p142 = scmp.lt.s32.totalorder %s14, 1
      %s143 = scalar_select %p142, %s14, 1
      %s144 = smul.addr %s143, 4
      %s145 = scalar_lea.vmem %s0, %s144
      %p146 = pneg %p35
      %p147 = pneg %p32
      %p148 = pneg %p56
      %p149 = pneg %p53
      %p150 = pneg %p77
      %p151 = pneg %p74
      %p152 = pneg %p103
      %p153 = pneg %p100
      %p154 = scmp.lt.s32.totalorder %s14, 1
      %s155 = scalar_select %p154, %s14, 1
      %s156 = smul.addr %s155, 8
      %s157 = scalar_lea.vmem %s3, %s156
      %p158 = scmp.lt.s32.totalorder %s14, 1
      %s159 = scalar_select %p158, %s14, 1
      %s160 = smul.addr %s159, 4
      %s161 = scalar_lea.vmem %s0, %s160
      %p162 = scmp.lt.s32.totalorder %s14, 1
      %s163 = scalar_select %p162, %s14, 1
      %s164 = smul.addr %s163, 8
      %s165 = scalar_lea.vmem %s3, %s164
      %v167 = vld [vmem:[%s161] sm:$0xf]
      %v168 = vld [vmem:[%s1] sm:$0xf]
      %v169 = vld [vmem:[%s1 + $0x4] sm:$0xf]
      %v170 = vld [vmem:[%s1 + $0x8] sm:$0xf]
      %v171 = vld [vmem:[%s1 + $0xc] sm:$0xf]
      %v172 = vld [vmem:[%s2] sm:$0x1]
      %v173 = vunpack.c.l.bf16 %v172
      %v174 = vlaneseq
      %v175 = vshrl.u32 %v174, 7
      %v176 = vsub.s32 0, %v175
      %v177 = vrot.slane %v173, %v176
      %v182 = vunpack.c.l.b16 %v168
      %v183 = vunpack.c.l.b16 %v169
      %v184 = vunpack.c.l.b16 %v170
      %v185 = vunpack.c.l.b16 %v171
      %v186 = vpack.c.b16 %v183, %v182
      %v187 = vpack.c.b16 %v185, %v184
      %vm190 = vcmask 261120
      %v192 = vsel %vm190, %v167, 0
      %194 = vmatprep.subr.bf16.mxu0 0
      %195 = vmatpush1.bf16.msra.mxu0 %v186
      %196 = vmatprep.subr.bf16.mxu0 0
      %197 = vmatpush1.bf16.msra.mxu0 %v187
      %198 = vmatprep.subr.bf16.mxu0 0
      %199 = vmatpush1.bf16.msra.mxu0 0
      %200 = vmatprep.subr.bf16.mxu0 0
      %201 = vmatpush1.bf16.msra.mxu0 0
      %202 = vmatprep.subr.bf16.mxu0 0
      %203 = vmatpush1.bf16.msra.mxu0 0
      %204 = vmatprep.subr.bf16.mxu0 0
      %205 = vmatpush1.bf16.msra.mxu0 0
      %206 = vmatprep.subr.bf16.mxu0 0
      %207 = vmatpush1.bf16.msra.mxu0 0
      %208 = vmatprep.subr.bf16.mxu0 0
      %209 = vmatpush1.bf16.msra.mxu0 0
      %210 = vmatprep.subr.bf16.mxu0 0
      %211 = vmatpush1.bf16.msra.mxu0 0
      %212 = vmatprep.subr.bf16.mxu0 0
      %213 = vmatpush1.bf16.msra.mxu0 0
      %214 = vmatprep.subr.bf16.mxu0 0
      %215 = vmatpush1.bf16.msra.mxu0 0
      %216 = vmatprep.subr.bf16.mxu0 0
      %217 = vmatpush1.bf16.msra.mxu0 0
      %218 = vmatprep.subr.bf16.mxu0 0
      %219 = vmatpush1.bf16.msra.mxu0 0
      %220 = vmatprep.subr.bf16.mxu0 0
      %221 = vmatpush1.bf16.msra.mxu0 0
      %222 = vmatprep.subr.bf16.mxu0 0
      %223 = vmatpush1.bf16.msra.mxu0 0
      %224 = vmatprep.subr.bf16.mxu0 0
      %225 = vmatpush1.bf16.msra.mxu0 0
      %226 = vmatprep.mubr.bf16.mxu0 0
      %227 = vmatmul.mubr.bf16.gmra.mrb[0].mxu0 %v192
      %v228 = vpop.f32.mrb[0].mxu0
      %v229 = vadd.f32 %v177, %v228
      %v230 = vpop.f32.mrb[0].mxu0
      %v231 = vpop.f32.mrb[0].mxu0
      %v232 = vpop.f32.mrb[0].mxu0
      %233 = vdwg.mxu0
      %234 = vst [vmem:[%s165] sm:$0xff] %v229
      %p235 = scmp.lt.s32.totalorder %s14, 1
      %s236 = scalar_select %p235, %s14, 1
      %s237 = smul.addr %s236, 8
      %s238 = scalar_lea.vmem %s3, %s237
      // Predicated region
      $region33: #{apc_forward.9} parent=31 // pred_check
        %p239 = pneg %p100
      $region34: #{apc_forward.9} parent=31 // pred_check_branch
        %241 = sbr.rel (%p239) target = $region36
      $region35: #{apc_forward.9} parent=31 // pred_region
        _
      $region36: #{apc_forward.9} parent=31 // pred_fallthru
        _
    $region32: #{apc_forward.9} parent=5 // pred_fallthru
      _
    %p242 = scmp.le.s32.totalorder 2, %s9
    // Predicated region
    $region37: #{apc_forward.9} parent=5 // pred_check
      %p243 = pneg %p242
    $region38: #{apc_forward.9} parent=5 // pred_check_branch
      %245 = sbr.rel (%p243) target = $region40
    $region39: #{apc_forward.9} parent=5 // pred_region
      %s246 = ssub.s32 %s9, 2
      // Predicated region
      $region41: #{apc_forward.9} parent=39 // pred_check
        %p247 = pneg %p106
      $region42: #{apc_forward.9} parent=39 // pred_check_branch
        %249 = sbr.rel (%p247) target = $region44
      $region43: #{apc_forward.9} parent=39 // pred_region
        %p250 = scmp.lt.s32.totalorder %s15, 1
        %s251 = scalar_select %p250, %s15, 1
        %s252 = smul.addr %s251, 8
        %s253 = scalar_lea.vmem %s3, %s252
      $region44: #{apc_forward.9} parent=39 // pred_fallthru
        _
    $region40: #{apc_forward.9} parent=5 // pred_fallthru
      _
  $region6: #{apc_forward.9} parent=0 // loop_footer
    %s13 = sadd.s32 1, %s9
  $region7: #{apc_forward.9} parent=0 // loop_footer_branch
    %8 = sbr.rel target = $region3
  $region8: #{apc_forward.9} parent=0 // loop_exit
    _

// kernel: apc_forward.6
$region0: #{apc_forward.6}
  #allocation0 [shape = 'u32[]', space=smem, size = 0x4, offset = 0x4, fixed_abs, tag = 'smem constant byte address 0x4 - core index']
  #allocation1 [shape = 'u32[144,128]{1,0:T(1,128)}', space=vmem, size = 0x12000, scoped, tag = 'internal scratch']
  #allocation2 [shape = 'f32[2,32]{1,0:T(2,128)}', space=vmem, size = 0x400, scoped, tag = 'scratch operand']
  #allocation3 [shape = 'f32[8,2,96]{2,1,0:T(2,128)}', space=vmem, size = 0x2000, scoped, tag = 'scratch operand']
  %s0 = inlined_call_operand.vmem [shape: bf16[8,2,32], index: 0, kind: input, shape index: {}]
  %s1 = inlined_call_operand.vmem [shape: bf16[32,96], index: 1, kind: input, shape index: {}]
  %s2 = inlined_call_operand.vmem [shape: f32[1,96], index: 2, kind: input, shape index: {}]
  %s3 = inlined_call_operand.vmem [shape: bf16[32,96], index: 3, kind: input, shape index: {}]
  %s4 = inlined_call_operand.vmem [shape: f32[1,32], index: 4, kind: input, shape index: {}]
  %s5 = inlined_call_operand.vmem [shape: bf16[8,2,32], index: 5, kind: output, shape index: {}]
  %s6 = sld [smem:[#allocation0]]
  $region34: #{apc_forward.6} parent=0
    _
  %s8 = ssub.s32 1, %s6
  %s9 = scalar_select 0, %s8, %s6
  // Predicated region
  $region2: #{apc_forward.6} parent=0 // pred_check
    _
  $region3: #{apc_forward.6} parent=0 // pred_check_branch
    %11 = sbr.rel (0) target = $region5
  $region4: #{apc_forward.6} parent=0 // pred_region
    _
  $region5: #{apc_forward.6} parent=0 // pred_fallthru
    _
  // Predicated region
  $region6: #{apc_forward.6} parent=0 // pred_check
    _
  $region7: #{apc_forward.6} parent=0 // pred_check_branch
    %13 = sbr.rel (0) target = $region9
  $region8: #{apc_forward.6} parent=0 // pred_region
    _
  $region9: #{apc_forward.6} parent=0 // pred_fallthru
    _
  // Predicated region
  $region10: #{apc_forward.6} parent=0 // pred_check
    _
  $region11: #{apc_forward.6} parent=0 // pred_check_branch
    %15 = sbr.rel (0) target = $region13
  $region12: #{apc_forward.6} parent=0 // pred_region
    _
  $region13: #{apc_forward.6} parent=0 // pred_fallthru
    _
  // Predicated region
  $region14: #{apc_forward.6} parent=0 // pred_check
    _
  $region15: #{apc_forward.6} parent=0 // pred_check_branch
    %17 = sbr.rel (0) target = $region17
  $region16: #{apc_forward.6} parent=0 // pred_region
    _
  $region17: #{apc_forward.6} parent=0 // pred_fallthru
    _
  // Predicated region
  $region18: #{apc_forward.6} parent=0 // pred_check
    _
  $region19: #{apc_forward.6} parent=0 // pred_check_branch
    %19 = sbr.rel (0) target = $region21
  $region20: #{apc_forward.6} parent=0 // pred_region
    _
  $region21: #{apc_forward.6} parent=0 // pred_fallthru
    _
  %p21 = scmp.eq.s32.totalorder 0, 0
  // Predicated region
  $region22: #{apc_forward.6} parent=0 // pred_check
    %p22 = pneg %p21
  $region23: #{apc_forward.6} parent=0 // pred_check_branch
    %24 = sbr.rel (%p22) target = $region25
  $region24: #{apc_forward.6} parent=0 // pred_region
    %vm25 = vcmask 254976
    %26 = vst.msk [vmem:[#allocation2] sm:$0x3] %vm25, 0.0
  $region25: #{apc_forward.6} parent=0 // pred_fallthru
    _
  %v27 = vld [vmem:[%s1] sm:$0xf]
  %v28 = vld [vmem:[%s1 + $0x4] sm:$0xf]
  %v29 = vld [vmem:[%s1 + $0x8] sm:$0xf]
  %v30 = vld [vmem:[%s1 + $0xc] sm:$0xf]
  %v31 = vld [vmem:[%s3] sm:$0xf]
  %v32 = vld [vmem:[%s3 + $0x4] sm:$0xf]
  %v33 = vld [vmem:[%s3 + $0x8] sm:$0xf]
  %v34 = vld [vmem:[%s3 + $0xc] sm:$0xf]
  %v35 = vld [vmem:[%s2] sm:$0x1]
  %v36 = vld [vmem:[%s4] sm:$0x1]
  %v38 = vlaneseq
  %v39 = vshrl.u32 %v38, 7
  %v40 = vsub.s32 0, %v39
  %v41 = vrot.slane %v36, %v40
  %v42 = vld [vmem:[%s0] sm:$0x1]
  %v44 = vlaneseq
  %v45 = vshrl.u32 %v44, 7
  %v46 = vsub.s32 0, %v45
  %v47 = vrot.slane %v35, %v46
  %v53 = vunpack.c.l.b16 %v27
  %v54 = vunpack.c.l.b16 %v28
  %v55 = vunpack.c.l.b16 %v29
  %v56 = vunpack.c.l.b16 %v30
  %v57 = vpack.c.b16 %v54, %v53
  %v58 = vpack.c.b16 %v56, %v55
  %vm61 = vcmask 261120
  %v63 = vsel %vm61, %v42, 0
  %65 = vmatprep.subr.bf16.mxu0 0
  %66 = vmatpush1.bf16.msra.mxu0 %v57
  %67 = vmatprep.subr.bf16.mxu0 0
  %68 = vmatpush1.bf16.msra.mxu0 %v58
  %69 = vmatprep.subr.bf16.mxu0 0
  %70 = vmatpush1.bf16.msra.mxu0 0
  %71 = vmatprep.subr.bf16.mxu0 0
  %72 = vmatpush1.bf16.msra.mxu0 0
  %73 = vmatprep.subr.bf16.mxu0 0
  %74 = vmatpush1.bf16.msra.mxu0 0
  %75 = vmatprep.subr.bf16.mxu0 0
  %76 = vmatpush1.bf16.msra.mxu0 0
  %77 = vmatprep.subr.bf16.mxu0 0
  %78 = vmatpush1.bf16.msra.mxu0 0
  %79 = vmatprep.subr.bf16.mxu0 0
  %80 = vmatpush1.bf16.msra.mxu0 0
  %81 = vmatprep.subr.bf16.mxu0 0
  %82 = vmatpush1.bf16.msra.mxu0 0
  %83 = vmatprep.subr.bf16.mxu0 0
  %84 = vmatpush1.bf16.msra.mxu0 0
  %85 = vmatprep.subr.bf16.mxu0 0
  %86 = vmatpush1.bf16.msra.mxu0 0
  %87 = vmatprep.subr.bf16.mxu0 0
  %88 = vmatpush1.bf16.msra.mxu0 0
  %89 = vmatprep.subr.bf16.mxu0 0
  %90 = vmatpush1.bf16.msra.mxu0 0
  %91 = vmatprep.subr.bf16.mxu0 0
  %92 = vmatpush1.bf16.msra.mxu0 0
  %93 = vmatprep.subr.bf16.mxu0 0
  %94 = vmatpush1.bf16.msra.mxu0 0
  %95 = vmatprep.subr.bf16.mxu0 0
  %96 = vmatpush1.bf16.msra.mxu0 0
  %97 = vmatprep.mubr.bf16.mxu0 0
  %98 = vmatmul.mubr.bf16.gmra.mrb[0].mxu0 %v63
  %v99 = vpop.f32.mrb[0].mxu0
  %v100 = vadd.f32 %v47, %v99
  %v101 = vpop.f32.mrb[0].mxu0
  %v102 = vpop.f32.mrb[0].mxu0
  %v103 = vpop.f32.mrb[0].mxu0
  %104 = vdwg.mxu0
  %vm105 = vcmask 779264
  %106 = vst.msk [vmem:[#allocation3] sm:$0x3] %vm105, %v100
  %s107 = scalar_lea.vmem %s0, 1
  %v108 = vld [vmem:[%s107] sm:$0x1]
  %v110 = vsel %vm61, %v108, 0
  %112 = vmatprep.subr.bf16.mxu0 0
  %113 = vmatpush1.bf16.msra.mxu0 %v57
  %114 = vmatprep.subr.bf16.mxu0 0
  %115 = vmatpush1.bf16.msra.mxu0 %v58
  %116 = vmatprep.subr.bf16.mxu0 0
  %117 = vmatpush1.bf16.msra.mxu0 0
  %118 = vmatprep.subr.bf16.mxu0 0
  %119 = vmatpush1.bf16.msra.mxu0 0
  %120 = vmatprep.subr.bf16.mxu0 0
  %121 = vmatpush1.bf16.msra.mxu0 0
  %122 = vmatprep.subr.bf16.mxu0 0
  %123 = vmatpush1.bf16.msra.mxu0 0
  %124 = vmatprep.subr.bf16.mxu0 0
  %125 = vmatpush1.bf16.msra.mxu0 0
  %126 = vmatprep.subr.bf16.mxu0 0
  %127 = vmatpush1.bf16.msra.mxu0 0
  %128 = vmatprep.subr.bf16.mxu0 0
  %129 = vmatpush1.bf16.msra.mxu0 0
  %130 = vmatprep.subr.bf16.mxu0 0
  %131 = vmatpush1.bf16.msra.mxu0 0
  %132 = vmatprep.subr.bf16.mxu0 0
  %133 = vmatpush1.bf16.msra.mxu0 0
  %134 = vmatprep.subr.bf16.mxu0 0
  %135 = vmatpush1.bf16.msra.mxu0 0
  %136 = vmatprep.subr.bf16.mxu0 0
  %137 = vmatpush1.bf16.msra.mxu0 0
  %138 = vmatprep.subr.bf16.mxu0 0
  %139 = vmatpush1.bf16.msra.mxu0 0
  %140 = vmatprep.subr.bf16.mxu0 0
  %141 = vmatpush1.bf16.msra.mxu0 0
  %142 = vmatprep.subr.bf16.mxu0 0
  %143 = vmatpush1.bf16.msra.mxu0 0
  %144 = vmatprep.mubr.bf16.mxu0 0
  %145 = vmatmul.mubr.bf16.gmra.mrb[0].mxu0 %v110
  %v146 = vpop.f32.mrb[0].mxu0
  %v147 = vadd.f32 %v47, %v146
  %v148 = vpop.f32.mrb[0].mxu0
  %v149 = vpop.f32.mrb[0].mxu0
  %v150 = vpop.f32.mrb[0].mxu0
  %151 = vdwg.mxu0
  %s152 = scalar_lea.vmem [#allocation3], 2
  %153 = vst.msk [vmem:[%s152] sm:$0x3] %vm105, %v147
  %s154 = scalar_lea.vmem %s0, 2
  %v155 = vld [vmem:[%s154] sm:$0x1]
  %v157 = vsel %vm61, %v155, 0
  %159 = vmatprep.subr.bf16.mxu0 0
  %160 = vmatpush1.bf16.msra.mxu0 %v57
  %161 = vmatprep.subr.bf16.mxu0 0
  %162 = vmatpush1.bf16.msra.mxu0 %v58
  %163 = vmatprep.subr.bf16.mxu0 0
  %164 = vmatpush1.bf16.msra.mxu0 0
  %165 = vmatprep.subr.bf16.mxu0 0
  %166 = vmatpush1.bf16.msra.mxu0 0
  %167 = vmatprep.subr.bf16.mxu0 0
  %168 = vmatpush1.bf16.msra.mxu0 0
  %169 = vmatprep.subr.bf16.mxu0 0
  %170 = vmatpush1.bf16.msra.mxu0 0
  %171 = vmatprep.subr.bf16.mxu0 0
  %172 = vmatpush1.bf16.msra.mxu0 0
  %173 = vmatprep.subr.bf16.mxu0 0
  %174 = vmatpush1.bf16.msra.mxu0 0
  %175 = vmatprep.subr.bf16.mxu0 0
  %176 = vmatpush1.bf16.msra.mxu0 0
  %177 = vmatprep.subr.bf16.mxu0 0
  %178 = vmatpush1.bf16.msra.mxu0 0
  %179 = vmatprep.subr.bf16.mxu0 0
  %180 = vmatpush1.bf16.msra.mxu0 0
  %181 = vmatprep.subr.bf16.mxu0 0
  %182 = vmatpush1.bf16.msra.mxu0 0
  %183 = vmatprep.subr.bf16.mxu0 0
  %184 = vmatpush1.bf16.msra.mxu0 0
  %185 = vmatprep.subr.bf16.mxu0 0
  %186 = vmatpush1.bf16.msra.mxu0 0
  %187 = vmatprep.subr.bf16.mxu0 0
  %188 = vmatpush1.bf16.msra.mxu0 0
  %189 = vmatprep.subr.bf16.mxu0 0
  %190 = vmatpush1.bf16.msra.mxu0 0
  %191 = vmatprep.mubr.bf16.mxu0 0
  %192 = vmatmul.mubr.bf16.gmra.mrb[0].mxu0 %v157
  %v193 = vpop.f32.mrb[0].mxu0
  %v194 = vadd.f32 %v47, %v193
  %v195 = vpop.f32.mrb[0].mxu0
  %v196 = vpop.f32.mrb[0].mxu0
  %v197 = vpop.f32.mrb[0].mxu0
  %198 = vdwg.mxu0
  %s199 = scalar_lea.vmem [#allocation3], 4
  %200 = vst.msk [vmem:[%s199] sm:$0x3] %vm105, %v194
  %s201 = scalar_lea.vmem %s0, 3
  %v202 = vld [vmem:[%s201] sm:$0x1]
  %v204 = vsel %vm61, %v202, 0
  %206 = vmatprep.subr.bf16.mxu0 0
  %207 = vmatpush1.bf16.msra.mxu0 %v57
  %208 = vmatprep.subr.bf16.mxu0 0
  %209 = vmatpush1.bf16.msra.mxu0 %v58
  %210 = vmatprep.subr.bf16.mxu0 0
  %211 = vmatpush1.bf16.msra.mxu0 0
  %212 = vmatprep.subr.bf16.mxu0 0
  %213 = vmatpush1.bf16.msra.mxu0 0
  %214 = vmatprep.subr.bf16.mxu0 0
  %215 = vmatpush1.bf16.msra.mxu0 0
  %216 = vmatprep.subr.bf16.mxu0 0
  %217 = vmatpush1.bf16.msra.mxu0 0
  %218 = vmatprep.subr.bf16.mxu0 0
  %219 = vmatpush1.bf16.msra.mxu0 0
  %220 = vmatprep.subr.bf16.mxu0 0
  %221 = vmatpush1.bf16.msra.mxu0 0
  %222 = vmatprep.subr.bf16.mxu0 0
  %223 = vmatpush1.bf16.msra.mxu0 0
  %224 = vmatprep.subr.bf16.mxu0 0
  %225 = vmatpush1.bf16.msra.mxu0 0
  %226 = vmatprep.subr.bf16.mxu0 0
  %227 = vmatpush1.bf16.msra.mxu0 0
  %228 = vmatprep.subr.bf16.mxu0 0
  %229 = vmatpush1.bf16.msra.mxu0 0
  %230 = vmatprep.subr.bf16.mxu0 0
  %231 = vmatpush1.bf16.msra.mxu0 0
  %232 = vmatprep.subr.bf16.mxu0 0
  %233 = vmatpush1.bf16.msra.mxu0 0
  %234 = vmatprep.subr.bf16.mxu0 0
  %235 = vmatpush1.bf16.msra.mxu0 0
  %236 = vmatprep.subr.bf16.mxu0 0
  %237 = vmatpush1.bf16.msra.mxu0 0
  %238 = vmatprep.mubr.bf16.mxu0 0
  %239 = vmatmul.mubr.bf16.gmra.mrb[0].mxu0 %v204
  %v240 = vpop.f32.mrb[0].mxu0
  %v241 = vadd.f32 %v47, %v240
  %v242 = vpop.f32.mrb[0].mxu0
  %v243 = vpop.f32.mrb[0].mxu0
  %v244 = vpop.f32.mrb[0].mxu0
  %245 = vdwg.mxu0
  %s246 = scalar_lea.vmem [#allocation3], 6
  %247 = vst.msk [vmem:[%s246] sm:$0x3] %vm105, %v241
  %s248 = scalar_lea.vmem %s0, 4
  %v249 = vld [vmem:[%s248] sm:$0x1]
  %v251 = vsel %vm61, %v249, 0
  %253 = vmatprep.subr.bf16.mxu0 0
  %254 = vmatpush1.bf16.msra.mxu0 %v57
  %255 = vmatprep.subr.bf16.mxu0 0
  %256 = vmatpush1.bf16.msra.mxu0 %v58
  %257 = vmatprep.subr.bf16.mxu0 0
  %258 = vmatpush1.bf16.msra.mxu0 0
  %259 = vmatprep.subr.bf16.mxu0 0
  %260 = vmatpush1.bf16.msra.mxu0 0
  %261 = vmatprep.subr.bf16.mxu0 0
  %262 = vmatpush1.bf16.msra.mxu0 0
  %263 = vmatprep.subr.bf16.mxu0 0
  %264 = vmatpush1.bf16.msra.mxu0 0
  %265 = vmatprep.subr.bf16.mxu0 0
  %266 = vmatpush1.bf16.msra.mxu0 0
  %267 = vmatprep.subr.bf16.mxu0 0
  %268 = vmatpush1.bf16.msra.mxu0 0
  %269 = vmatprep.subr.bf16.mxu0 0
  %270 = vmatpush1.bf16.msra.mxu0 0
  %271 = vmatprep.subr.bf16.mxu0 0
  %272 = vmatpush1.bf16.msra.mxu0 0
  %273 = vmatprep.subr.bf16.mxu0 0
  %274 = vmatpush1.bf16.msra.mxu0 0
  %275 = vmatprep.subr.bf16.mxu0 0
  %276 = vmatpush1.bf16.msra.mxu0 0
  %277 = vmatprep.subr.bf16.mxu0 0
  %278 = vmatpush1.bf16.msra.mxu0 0
  %279 = vmatprep.subr.bf16.mxu0 0
  %280 = vmatpush1.bf16.msra.mxu0 0
  %281 = vmatprep.subr.bf16.mxu0 0
  %282 = vmatpush1.bf16.msra.mxu0 0
  %283 = vmatprep.subr.bf16.mxu0 0
  %284 = vmatpush1.bf16.msra.mxu0 0
  %285 = vmatprep.mubr.bf16.mxu0 0
  %286 = vmatmul.mubr.bf16.gmra.mrb[0].mxu0 %v251
  %v287 = vpop.f32.mrb[0].mxu0
  %v288 = vadd.f32 %v47, %v287
  %v289 = vpop.f32.mrb[0].mxu0
  %v290 = vpop.f32.mrb[0].mxu0
  %v291 = vpop.f32.mrb[0].mxu0
  %292 = vdwg.mxu0
  %s293 = scalar_lea.vmem [#allocation3], 8
  %294 = vst.msk [vmem:[%s293] sm:$0x3] %vm105, %v288
  %s295 = scalar_lea.vmem %s0, 5
  %v296 = vld [vmem:[%s295] sm:$0x1]
  %v298 = vsel %vm61, %v296, 0
  %300 = vmatprep.subr.bf16.mxu0 0
  %301 = vmatpush1.bf16.msra.mxu0 %v57
  %302 = vmatprep.subr.bf16.mxu0 0
  %303 = vmatpush1.bf16.msra.mxu0 %v58
  %304 = vmatprep.subr.bf16.mxu0 0
  %305 = vmatpush1.bf16.msra.mxu0 0
  %306 = vmatprep.subr.bf16.mxu0 0
  %307 = vmatpush1.bf16.msra.mxu0 0
  %308 = vmatprep.subr.bf16.mxu0 0
  %309 = vmatpush1.bf16.msra.mxu0 0
  %310 = vmatprep.subr.bf16.mxu0 0
  %311 = vmatpush1.bf16.msra.mxu0 0
  %312 = vmatprep.subr.bf16.mxu0 0
  %313 = vmatpush1.bf16.msra.mxu0 0
  %314 = vmatprep.subr.bf16.mxu0 0
  %315 = vmatpush1.bf16.msra.mxu0 0
  %316 = vmatprep.subr.bf16.mxu0 0
  %317 = vmatpush1.bf16.msra.mxu0 0
  %318 = vmatprep.subr.bf16.mxu0 0
  %319 = vmatpush1.bf16.msra.mxu0 0
  %320 = vmatprep.subr.bf16.mxu0 0
  %321 = vmatpush1.bf16.msra.mxu0 0
  %322 = vmatprep.subr.bf16.mxu0 0
  %323 = vmatpush1.bf16.msra.mxu0 0
  %324 = vmatprep.subr.bf16.mxu0 0
  %325 = vmatpush1.bf16.msra.mxu0 0
  %326 = vmatprep.subr.bf16.mxu0 0
  %327 = vmatpush1.bf16.msra.mxu0 0
  %328 = vmatprep.subr.bf16.mxu0 0
  %329 = vmatpush1.bf16.msra.mxu0 0
  %330 = vmatprep.subr.bf16.mxu0 0
  %331 = vmatpush1.bf16.msra.mxu0 0
  %332 = vmatprep.mubr.bf16.mxu0 0
  %333 = vmatmul.mubr.bf16.gmra.mrb[0].mxu0 %v298
  %v334 = vpop.f32.mrb[0].mxu0
  %v335 = vadd.f32 %v47, %v334
  %v336 = vpop.f32.mrb[0].mxu0
  %v337 = vpop.f32.mrb[0].mxu0
  %v338 = vpop.f32.mrb[0].mxu0
  %339 = vdwg.mxu0
  %s340 = scalar_lea.vmem [#allocation3], 10
  %341 = vst.msk [vmem:[%s340] sm:$0x3] %vm105, %v335
  %s342 = scalar_lea.vmem %s0, 6
  %v343 = vld [vmem:[%s342] sm:$0x1]
  %v345 = vsel %vm61, %v343, 0
  %347 = vmatprep.subr.bf16.mxu0 0
  %348 = vmatpush1.bf16.msra.mxu0 %v57
  %349 = vmatprep.subr.bf16.mxu0 0
  %350 = vmatpush1.bf16.msra.mxu0 %v58
  %351 = vmatprep.subr.bf16.mxu0 0
  %352 = vmatpush1.bf16.msra.mxu0 0
  %353 = vmatprep.subr.bf16.mxu0 0
  %354 = vmatpush1.bf16.msra.mxu0 0
  %355 = vmatprep.subr.bf16.mxu0 0
  %356 = vmatpush1.bf16.msra.mxu0 0
  %357 = vmatprep.subr.bf16.mxu0 0
  %358 = vmatpush1.bf16.msra.mxu0 0
  %359 = vmatprep.subr.bf16.mxu0 0
  %360 = vmatpush1.bf16.msra.mxu0 0
  %361 = vmatprep.subr.bf16.mxu0 0
  %362 = vmatpush1.bf16.msra.mxu0 0
  %363 = vmatprep.subr.bf16.mxu0 0
  %364 = vmatpush1.bf16.msra.mxu0 0
  %365 = vmatprep.subr.bf16.mxu0 0
  %366 = vmatpush1.bf16.msra.mxu0 0
  %367 = vmatprep.subr.bf16.mxu0 0
  %368 = vmatpush1.bf16.msra.mxu0 0
  %369 = vmatprep.subr.bf16.mxu0 0
  %370 = vmatpush1.bf16.msra.mxu0 0
  %371 = vmatprep.subr.bf16.mxu0 0
  %372 = vmatpush1.bf16.msra.mxu0 0
  %373 = vmatprep.subr.bf16.mxu0 0
  %374 = vmatpush1.bf16.msra.mxu0 0
  %375 = vmatprep.subr.bf16.mxu0 0
  %376 = vmatpush1.bf16.msra.mxu0 0
  %377 = vmatprep.subr.bf16.mxu0 0
  %378 = vmatpush1.bf16.msra.mxu0 0
  %379 = vmatprep.mubr.bf16.mxu0 0
  %380 = vmatmul.mubr.bf16.gmra.mrb[0].mxu0 %v345
  %v381 = vpop.f32.mrb[0].mxu0
  %v382 = vadd.f32 %v47, %v381
  %v383 = vpop.f32.mrb[0].mxu0
  %v384 = vpop.f32.mrb[0].mxu0
  %v385 = vpop.f32.mrb[0].mxu0
  %386 = vdwg.mxu0
  %s387 = scalar_lea.vmem [#allocation3], 12
  %388 = vst.msk [vmem:[%s387] sm:$0x3] %vm105, %v382
  %s389 = scalar_lea.vmem %s0, 7
  %v390 = vld [vmem:[%s389] sm:$0x1]
  %v392 = vsel %vm61, %v390, 0
  %394 = vmatprep.subr.bf16.mxu0 0
  %395 = vmatpush1.bf16.msra.mxu0 %v57
  %396 = vmatprep.subr.bf16.mxu0 0
  %397 = vmatpush1.bf16.msra.mxu0 %v58
  %398 = vmatprep.subr.bf16.mxu0 0
  %399 = vmatpush1.bf16.msra.mxu0 0
  %400 = vmatprep.subr.bf16.mxu0 0
  %401 = vmatpush1.bf16.msra.mxu0 0
  %402 = vmatprep.subr.bf16.mxu0 0
  %403 = vmatpush1.bf16.msra.mxu0 0
  %404 = vmatprep.subr.bf16.mxu0 0
  %405 = vmatpush1.bf16.msra.mxu0 0
  %406 = vmatprep.subr.bf16.mxu0 0
  %407 = vmatpush1.bf16.msra.mxu0 0
  %408 = vmatprep.subr.bf16.mxu0 0
  %409 = vmatpush1.bf16.msra.mxu0 0
  %410 = vmatprep.subr.bf16.mxu0 0
  %411 = vmatpush1.bf16.msra.mxu0 0
  %412 = vmatprep.subr.bf16.mxu0 0
  %413 = vmatpush1.bf16.msra.mxu0 0
  %414 = vmatprep.subr.bf16.mxu0 0
  %415 = vmatpush1.bf16.msra.mxu0 0
  %416 = vmatprep.subr.bf16.mxu0 0
  %417 = vmatpush1.bf16.msra.mxu0 0
  %418 = vmatprep.subr.bf16.mxu0 0
  %419 = vmatpush1.bf16.msra.mxu0 0
  %420 = vmatprep.subr.bf16.mxu0 0
  %421 = vmatpush1.bf16.msra.mxu0 0
  %422 = vmatprep.subr.bf16.mxu0 0
  %423 = vmatpush1.bf16.msra.mxu0 0
  %424 = vmatprep.subr.bf16.mxu0 0
  %425 = vmatpush1.bf16.msra.mxu0 0
  %426 = vmatprep.mubr.bf16.mxu0 0
  %427 = vmatmul.mubr.bf16.gmra.mrb[0].mxu0 %v392
  %v428 = vpop.f32.mrb[0].mxu0
  %v429 = vadd.f32 %v47, %v428
  %v430 = vpop.f32.mrb[0].mxu0
  %v431 = vpop.f32.mrb[0].mxu0
  %v432 = vpop.f32.mrb[0].mxu0
  %433 = vdwg.mxu0
  %s434 = scalar_lea.vmem [#allocation3], 14
  %435 = vst.msk [vmem:[%s434] sm:$0x3] %vm105, %v429
  %v436 = vld [vmem:[#allocation2] sm:$0x3]
  %v437 = vld [vmem:[#allocation3] sm:$0x3]
  %v438 = vpack.c.bf16 %v436, %v436
  %v443 = vunpack.c.l.b16 %v31
  %v444 = vunpack.c.l.b16 %v32
  %v445 = vunpack.c.l.b16 %v33
  %v446 = vunpack.c.l.b16 %v34
  %v447 = vpack.c.b16 %v444, %v443
  %v448 = vpack.c.b16 %v446, %v445
  %v452 = vsel %vm61, %v438, 0
  %454 = vmatprep.subr.bf16.mxu0 0
  %455 = vmatpush1.bf16.msra.mxu0 %v447
  %456 = vmatprep.subr.bf16.mxu0 0
  %457 = vmatpush1.bf16.msra.mxu0 %v448
  %458 = vmatprep.subr.bf16.mxu0 0
  %459 = vmatpush1.bf16.msra.mxu0 0
  %460 = vmatprep.subr.bf16.mxu0 0
  %461 = vmatpush1.bf16.msra.mxu0 0
  %462 = vmatprep.subr.bf16.mxu0 0
  %463 = vmatpush1.bf16.msra.mxu0 0
  %464 = vmatprep.subr.bf16.mxu0 0
  %465 = vmatpush1.bf16.msra.mxu0 0
  %466 = vmatprep.subr.bf16.mxu0 0
  %467 = vmatpush1.bf16.msra.mxu0 0
  %468 = vmatprep.subr.bf16.mxu0 0
  %469 = vmatpush1.bf16.msra.mxu0 0
  %470 = vmatprep.subr.bf16.mxu0 0
  %471 = vmatpush1.bf16.msra.mxu0 0
  %472 = vmatprep.subr.bf16.mxu0 0
  %473 = vmatpush1.bf16.msra.mxu0 0
  %474 = vmatprep.subr.bf16.mxu0 0
  %475 = vmatpush1.bf16.msra.mxu0 0
  %476 = vmatprep.subr.bf16.mxu0 0
  %477 = vmatpush1.bf16.msra.mxu0 0
  %478 = vmatprep.subr.bf16.mxu0 0
  %479 = vmatpush1.bf16.msra.mxu0 0
  %480 = vmatprep.subr.bf16.mxu0 0
  %481 = vmatpush1.bf16.msra.mxu0 0
  %482 = vmatprep.subr.bf16.mxu0 0
  %483 = vmatpush1.bf16.msra.mxu0 0
  %484 = vmatprep.subr.bf16.mxu0 0
  %485 = vmatpush1.bf16.msra.mxu0 0
  %486 = vmatprep.mubr.bf16.mxu0 0
  %487 = vmatmul.mubr.bf16.gmra.mrb[0].mxu0 %v452
  %v488 = vpop.f32.mrb[0].mxu0
  %v489 = vadd.f32 0.0, %v488
  %v490 = vpop.f32.mrb[0].mxu0
  %v491 = vpop.f32.mrb[0].mxu0
  %v492 = vpop.f32.mrb[0].mxu0
  %493 = vdwg.mxu0
  %v494 = vadd.f32 %v437, %v489
  %v495 = vxor.u32 %v494, 2147483648
  %v496 = vmul.f32 %v495, 1.442695
  %v497 = vpow.pop %v496
  %v498 = vadd.f32 %v497, 1.0
  %v499 = vrcp.pop %v498
  %v500 = vmul.f32 1.0, %v499
  %501 = vrot.lane.b32.xlu0 %v41, 64
  %v502 = vpop.permute.xlu0 %501
  %v504 = vadd.f32 %v489, %v502
  %506 = vrot.lane.b32.xlu0 %v504, 64
  %v507 = vpop.permute.xlu0 %506
  %v509 = vmul.f32 %v500, %v507
  %511 = vrot.lane.b32.xlu0 %v509, 64
  %v512 = vpop.permute.xlu0 %511
  %v514 = vadd.f32 %v437, %v512
  %v515 = vtanh.pop %v514
  %v516 = vsub.f32 1.0, %v500
  %518 = vrot.lane.b32.xlu0 %v515, 96
  %v519 = vpop.permute.xlu0 %518
  %v521 = vmul.f32 %v516, %v519
  %523 = vrot.lane.b32.xlu0 %v436, 32
  %v524 = vpop.permute.xlu0 %523
  %v526 = vmul.f32 %v500, %v524
  %v527 = vadd.f32 %v521, %v526
  %v528 = vld [vmem:[%s0] sm:$0x1]
  %v529 = vunpack.c.l.bf16 %v528
  %v532 = vunpack.c.l.s4 1983009808
  %v533 = vunpack.c.0.s8 %v532
  %v534 = vlaneseq
  %v535 = vshrl.u32 %v534, 7
  %v536 = vsub.s32 %v533, %v535
  %v537 = vrot.slane %v529, %v536
  %538 = vrot.lane.b32.xlu0 %v537, 32
  %v539 = vpop.permute.xlu0 %538
  %v541 = vadd.f32 %v527, %v539
  %v542 = vpack.c.bf16 %v541, %v541
  %v545 = vunpack.c.l.s4 1966171168
  %v546 = vunpack.c.0.s8 %v545
  %v547 = vlaneseq
  %v548 = vshrl.u32 %v547, 7
  %v549 = vsub.s32 %v546, %v548
  %v550 = vrot.slane %v542, %v549
  %v552 = vunpack.c.l.s4 1966171168
  %v553 = vunpack.c.0.s8 %v552
  %v554 = vlaneseq
  %v555 = vshrl.u32 %v554, 7
  %v556 = vsub.s32 %v553, %v555
  %v557 = vrot.slane %v550, %v556
  %558 = vrot.lane.b32.xlu0 %v557, 96
  %v559 = vpop.permute.xlu0 %558
  %vm561 = vcmask 253952
  %562 = vst.msk [vmem:[%s5] sm:$0x1] %vm561, %v559
  %v563 = vld [vmem:[%s152] sm:$0x3]
  %v564 = vpack.c.bf16 %v527, %v527
  %566 = vrot.lane.b32.xlu0 %v564, 96
  %v567 = vpop.permute.xlu0 %566
  %v569 = vsel %vm61, %v567, 0
  %571 = vmatprep.subr.bf16.mxu0 0
  %572 = vmatpush1.bf16.msra.mxu0 %v447
  %573 = vmatprep.subr.bf16.mxu0 0
  %574 = vmatpush1.bf16.msra.mxu0 %v448
  %575 = vmatprep.subr.bf16.mxu0 0
  %576 = vmatpush1.bf16.msra.mxu0 0
  %577 = vmatprep.subr.bf16.mxu0 0
  %578 = vmatpush1.bf16.msra.mxu0 0
  %579 = vmatprep.subr.bf16.mxu0 0
  %580 = vmatpush1.bf16.msra.mxu0 0
  %581 = vmatprep.subr.bf16.mxu0 0
  %582 = vmatpush1.bf16.msra.mxu0 0
  %583 = vmatprep.subr.bf16.mxu0 0
  %584 = vmatpush1.bf16.msra.mxu0 0
  %585 = vmatprep.subr.bf16.mxu0 0
  %586 = vmatpush1.bf16.msra.mxu0 0
  %587 = vmatprep.subr.bf16.mxu0 0
  %588 = vmatpush1.bf16.msra.mxu0 0
  %589 = vmatprep.subr.bf16.mxu0 0
  %590 = vmatpush1.bf16.msra.mxu0 0
  %591 = vmatprep.subr.bf16.mxu0 0
  %592 = vmatpush1.bf16.msra.mxu0 0
  %593 = vmatprep.subr.bf16.mxu0 0
  %594 = vmatpush1.bf16.msra.mxu0 0
  %595 = vmatprep.subr.bf16.mxu0 0
  %596 = vmatpush1.bf16.msra.mxu0 0
  %597 = vmatprep.subr.bf16.mxu0 0
  %598 = vmatpush1.bf16.msra.mxu0 0
  %599 = vmatprep.subr.bf16.mxu0 0
  %600 = vmatpush1.bf16.msra.mxu0 0
  %601 = vmatprep.subr.bf16.mxu0 0
  %602 = vmatpush1.bf16.msra.mxu0 0
  %603 = vmatprep.mubr.bf16.mxu0 0
  %604 = vmatmul.mubr.bf16.gmra.mrb[0].mxu0 %v569
  %v605 = vpop.f32.mrb[0].mxu0
  %v606 = vadd.f32 0.0, %v605
  %v607 = vpop.f32.mrb[0].mxu0
  %v608 = vpop.f32.mrb[0].mxu0
  %v609 = vpop.f32.mrb[0].mxu0
  %610 = vdwg.mxu0
  %v611 = vadd.f32 %v563, %v606
  %v612 = vxor.u32 %v611, 2147483648
  %v613 = vmul.f32 %v612, 1.442695
  %v614 = vpow.pop %v613
  %v615 = vadd.f32 %v614, 1.0
  %v616 = vrcp.pop %v615
  %v617 = vmul.f32 1.0, %v616
  %v618 = vadd.f32 %v606, %v502
  %620 = vrot.lane.b32.xlu0 %v618, 64
  %v621 = vpop.permute.xlu0 %620
  %v623 = vmul.f32 %v617, %v621
  %625 = vrot.lane.b32.xlu0 %v623, 64
  %v626 = vpop.permute.xlu0 %625
  %v628 = vadd.f32 %v563, %v626
  %v629 = vtanh.pop %v628
  %v630 = vsub.f32 1.0, %v617
  %632 = vrot.lane.b32.xlu0 %v629, 96
  %v633 = vpop.permute.xlu0 %632
  %v635 = vmul.f32 %v630, %v633
  %v636 = vmul.f32 %v617, %v527
  %v637 = vadd.f32 %v635, %v636
  %v638 = vld [vmem:[%s107] sm:$0x1]
  %v639 = vunpack.c.l.bf16 %v638
  %v642 = vunpack.c.l.s4 1983009808
  %v643 = vunpack.c.0.s8 %v642
  %v644 = vlaneseq
  %v645 = vshrl.u32 %v644, 7
  %v646 = vsub.s32 %v643, %v645
  %v647 = vrot.slane %v639, %v646
  %648 = vrot.lane.b32.xlu0 %v647, 32
  %v649 = vpop.permute.xlu0 %648
  %v651 = vadd.f32 %v637, %v649
  %v652 = vpack.c.bf16 %v651, %v651
  %v655 = vunpack.c.l.s4 1966171168
  %v656 = vunpack.c.0.s8 %v655
  %v657 = vlaneseq
  %v658 = vshrl.u32 %v657, 7
  %v659 = vsub.s32 %v656, %v658
  %v660 = vrot.slane %v652, %v659
  %v662 = vunpack.c.l.s4 1966171168
  %v663 = vunpack.c.0.s8 %v662
  %v664 = vlaneseq
  %v665 = vshrl.u32 %v664, 7
  %v666 = vsub.s32 %v663, %v665
  %v667 = vrot.slane %v660, %v666
  %668 = vrot.lane.b32.xlu0 %v667, 96
  %v669 = vpop.permute.xlu0 %668
  %s671 = scalar_lea.vmem %s5, 1
  %672 = vst.msk [vmem:[%s671] sm:$0x1] %vm561, %v669
  %v673 = vld [vmem:[%s199] sm:$0x3]
  %v674 = vpack.c.bf16 %v637, %v637
  %676 = vrot.lane.b32.xlu0 %v674, 96
  %v677 = vpop.permute.xlu0 %676
  %v679 = vsel %vm61, %v677, 0
  %681 = vmatprep.subr.bf16.mxu0 0
  %682 = vmatpush1.bf16.msra.mxu0 %v447
  %683 = vmatprep.subr.bf16.mxu0 0
  %684 = vmatpush1.bf16.msra.mxu0 %v448
  %685 = vmatprep.subr.bf16.mxu0 0
  %686 = vmatpush1.bf16.msra.mxu0 0
  %687 = vmatprep.subr.bf16.mxu0 0
  %688 = vmatpush1.bf16.msra.mxu0 0
  %689 = vmatprep.subr.bf16.mxu0 0
  %690 = vmatpush1.bf16.msra.mxu0 0
  %691 = vmatprep.subr.bf16.mxu0 0
  %692 = vmatpush1.bf16.msra.mxu0 0
  %693 = vmatprep.subr.bf16.mxu0 0
  %694 = vmatpush1.bf16.msra.mxu0 0
  %695 = vmatprep.subr.bf16.mxu0 0
  %696 = vmatpush1.bf16.msra.mxu0 0
  %697 = vmatprep.subr.bf16.mxu0 0
  %698 = vmatpush1.bf16.msra.mxu0 0
  %699 = vmatprep.subr.bf16.mxu0 0
  %700 = vmatpush1.bf16.msra.mxu0 0
  %701 = vmatprep.subr.bf16.mxu0 0
  %702 = vmatpush1.bf16.msra.mxu0 0
  %703 = vmatprep.subr.bf16.mxu0 0
  %704 = vmatpush1.bf16.msra.mxu0 0
  %705 = vmatprep.subr.bf16.mxu0 0
  %706 = vmatpush1.bf16.msra.mxu0 0
  %707 = vmatprep.subr.bf16.mxu0 0
  %708 = vmatpush1.bf16.msra.mxu0 0
  %709 = vmatprep.subr.bf16.mxu0 0
  %710 = vmatpush1.bf16.msra.mxu0 0
  %711 = vmatprep.subr.bf16.mxu0 0
  %712 = vmatpush1.bf16.msra.mxu0 0
  %713 = vmatprep.mubr.bf16.mxu0 0
  %714 = vmatmul.mubr.bf16.gmra.mrb[0].mxu0 %v679
  %v715 = vpop.f32.mrb[0].mxu0
  %v716 = vadd.f32 0.0, %v715
  %v717 = vpop.f32.mrb[0].mxu0
  %v718 = vpop.f32.mrb[0].mxu0
  %v719 = vpop.f32.mrb[0].mxu0
  %720 = vdwg.mxu0
  %v721 = vadd.f32 %v673, %v716
  %v722 = vxor.u32 %v721, 2147483648
  %v723 = vmul.f32 %v722, 1.442695
  %v724 = vpow.pop %v723
  %v725 = vadd.f32 %v724, 1.0
  %v726 = vrcp.pop %v725
  %v727 = vmul.f32 1.0, %v726
  %v728 = vadd.f32 %v716, %v502
  %730 = vrot.lane.b32.xlu0 %v728, 64
  %v731 = vpop.permute.xlu0 %730
  %v733 = vmul.f32 %v727, %v731
  %735 = vrot.lane.b32.xlu0 %v733, 64
  %v736 = vpop.permute.xlu0 %735
  %v738 = vadd.f32 %v673, %v736
  %v739 = vtanh.pop %v738
  %v740 = vsub.f32 1.0, %v727
  %742 = vrot.lane.b32.xlu0 %v739, 96
  %v743 = vpop.permute.xlu0 %742
  %v745 = vmul.f32 %v740, %v743
  %v746 = vmul.f32 %v727, %v637
  %v747 = vadd.f32 %v745, %v746
  %v748 = vld [vmem:[%s154] sm:$0x1]
  %v749 = vunpack.c.l.bf16 %v748
  %v752 = vunpack.c.l.s4 1983009808
  %v753 = vunpack.c.0.s8 %v752
  %v754 = vlaneseq
  %v755 = vshrl.u32 %v754, 7
  %v756 = vsub.s32 %v753, %v755
  %v757 = vrot.slane %v749, %v756
  %758 = vrot.lane.b32.xlu0 %v757, 32
  %v759 = vpop.permute.xlu0 %758
  %v761 = vadd.f32 %v747, %v759
  %v762 = vpack.c.bf16 %v761, %v761
  %v765 = vunpack.c.l.s4 1966171168
  %v766 = vunpack.c.0.s8 %v765
  %v767 = vlaneseq
  %v768 = vshrl.u32 %v767, 7
  %v769 = vsub.s32 %v766, %v768
  %v770 = vrot.slane %v762, %v769
  %v772 = vunpack.c.l.s4 1966171168
  %v773 = vunpack.c.0.s8 %v772
  %v774 = vlaneseq
  %v775 = vshrl.u32 %v774, 7
  %v776 = vsub.s32 %v773, %v775
  %v777 = vrot.slane %v770, %v776
  %778 = vrot.lane.b32.xlu0 %v777, 96
  %v779 = vpop.permute.xlu0 %778
  %s781 = scalar_lea.vmem %s5, 2
  %782 = vst.msk [vmem:[%s781] sm:$0x1] %vm561, %v779
  %v783 = vld [vmem:[%s246] sm:$0x3]
  %v784 = vpack.c.bf16 %v747, %v747
  %786 = vrot.lane.b32.xlu0 %v784, 96
  %v787 = vpop.permute.xlu0 %786
  %v789 = vsel %vm61, %v787, 0
  %791 = vmatprep.subr.bf16.mxu0 0
  %792 = vmatpush1.bf16.msra.mxu0 %v447
  %793 = vmatprep.subr.bf16.mxu0 0
  %794 = vmatpush1.bf16.msra.mxu0 %v448
  %795 = vmatprep.subr.bf16.mxu0 0
  %796 = vmatpush1.bf16.msra.mxu0 0
  %797 = vmatprep.subr.bf16.mxu0 0
  %798 = vmatpush1.bf16.msra.mxu0 0
  %799 = vmatprep.subr.bf16.mxu0 0
  %800 = vmatpush1.bf16.msra.mxu0 0
  %801 = vmatprep.subr.bf16.mxu0 0
  %802 = vmatpush1.bf16.msra.mxu0 0
  %803 = vmatprep.subr.bf16.mxu0 0
  %804 = vmatpush1.bf16.msra.mxu0 0
  %805 = vmatprep.subr.bf16.mxu0 0
  %806 = vmatpush1.bf16.msra.mxu0 0
  %807 = vmatprep.subr.bf16.mxu0 0
  %808 = vmatpush1.bf16.msra.mxu0 0
  %809 = vmatprep.subr.bf16.mxu0 0
  %810 = vmatpush1.bf16.msra.mxu0 0
  %811 = vmatprep.subr.bf16.mxu0 0
  %812 = vmatpush1.bf16.msra.mxu0 0
  %813 = vmatprep.subr.bf16.mxu0 0
  %814 = vmatpush1.bf16.msra.mxu0 0
  %815 = vmatprep.subr.bf16.mxu0 0
  %816 = vmatpush1.bf16.msra.mxu0 0
  %817 = vmatprep.subr.bf16.mxu0 0
  %818 = vmatpush1.bf16.msra.mxu0 0
  %819 = vmatprep.subr.bf16.mxu0 0
  %820 = vmatpush1.bf16.msra.mxu0 0
  %821 = vmatprep.subr.bf16.mxu0 0
  %822 = vmatpush1.bf16.msra.mxu0 0
  %823 = vmatprep.mubr.bf16.mxu0 0
  %824 = vmatmul.mubr.bf16.gmra.mrb[0].mxu0 %v789
  %v825 = vpop.f32.mrb[0].mxu0
  %v826 = vadd.f32 0.0, %v825
  %v827 = vpop.f32.mrb[0].mxu0
  %v828 = vpop.f32.mrb[0].mxu0
  %v829 = vpop.f32.mrb[0].mxu0
  %830 = vdwg.mxu0
  %v831 = vadd.f32 %v783, %v826
  %v832 = vxor.u32 %v831, 2147483648
  %v833 = vmul.f32 %v832, 1.442695
  %v834 = vpow.pop %v833
  %v835 = vadd.f32 %v834, 1.0
  %v836 = vrcp.pop %v835
  %v837 = vmul.f32 1.0, %v836
  %v838 = vadd.f32 %v826, %v502
  %840 = vrot.lane.b32.xlu0 %v838, 64
  %v841 = vpop.permute.xlu0 %840
  %v843 = vmul.f32 %v837, %v841
  %845 = vrot.lane.b32.xlu0 %v843, 64
  %v846 = vpop.permute.xlu0 %845
  %v848 = vadd.f32 %v783, %v846
  %v849 = vtanh.pop %v848
  %v850 = vsub.f32 1.0, %v837
  %852 = vrot.lane.b32.xlu0 %v849, 96
  %v853 = vpop.permute.xlu0 %852
  %v855 = vmul.f32 %v850, %v853
  %v856 = vmul.f32 %v837, %v747
  %v857 = vadd.f32 %v855, %v856
  %v858 = vld [vmem:[%s201] sm:$0x1]
  %v859 = vunpack.c.l.bf16 %v858
  %v862 = vunpack.c.l.s4 1983009808
  %v863 = vunpack.c.0.s8 %v862
  %v864 = vlaneseq
  %v865 = vshrl.u32 %v864, 7
  %v866 = vsub.s32 %v863, %v865
  %v867 = vrot.slane %v859, %v866
  %868 = vrot.lane.b32.xlu0 %v867, 32
  %v869 = vpop.permute.xlu0 %868
  %v871 = vadd.f32 %v857, %v869
  %v872 = vpack.c.bf16 %v871, %v871
  %v875 = vunpack.c.l.s4 1966171168
  %v876 = vunpack.c.0.s8 %v875
  %v877 = vlaneseq
  %v878 = vshrl.u32 %v877, 7
  %v879 = vsub.s32 %v876, %v878
  %v880 = vrot.slane %v872, %v879
  %v882 = vunpack.c.l.s4 1966171168
  %v883 = vunpack.c.0.s8 %v882
  %v884 = vlaneseq
  %v885 = vshrl.u32 %v884, 7
  %v886 = vsub.s32 %v883, %v885
  %v887 = vrot.slane %v880, %v886
  %888 = vrot.lane.b32.xlu0 %v887, 96
  %v889 = vpop.permute.xlu0 %888
  %s891 = scalar_lea.vmem %s5, 3
  %892 = vst.msk [vmem:[%s891] sm:$0x1] %vm561, %v889
  %v893 = vld [vmem:[%s293] sm:$0x3]
  %v894 = vpack.c.bf16 %v857, %v857
  %896 = vrot.lane.b32.xlu0 %v894, 96
  %v897 = vpop.permute.xlu0 %896
  %v899 = vsel %vm61, %v897, 0
  %901 = vmatprep.subr.bf16.mxu0 0
  %902 = vmatpush1.bf16.msra.mxu0 %v447
  %903 = vmatprep.subr.bf16.mxu0 0
  %904 = vmatpush1.bf16.msra.mxu0 %v448
  %905 = vmatprep.subr.bf16.mxu0 0
  %906 = vmatpush1.bf16.msra.mxu0 0
  %907 = vmatprep.subr.bf16.mxu0 0
  %908 = vmatpush1.bf16.msra.mxu0 0
  %909 = vmatprep.subr.bf16.mxu0 0
  %910 = vmatpush1.bf16.msra.mxu0 0
  %911 = vmatprep.subr.bf16.mxu0 0
  %912 = vmatpush1.bf16.msra.mxu0 0
  %913 = vmatprep.subr.bf16.mxu0 0
  %914 = vmatpush1.bf16.msra.mxu0 0
  %915 = vmatprep.subr.bf16.mxu0 0
  %916 = vmatpush1.bf16.msra.mxu0 0
  %917 = vmatprep.subr.bf16.mxu0 0
  %918 = vmatpush1.bf16.msra.mxu0 0
  %919 = vmatprep.subr.bf16.mxu0 0
  %920 = vmatpush1.bf16.msra.mxu0 0
  %921 = vmatprep.subr.bf16.mxu0 0
  %922 = vmatpush1.bf16.msra.mxu0 0
  %923 = vmatprep.subr.bf16.mxu0 0
  %924 = vmatpush1.bf16.msra.mxu0 0
  %925 = vmatprep.subr.bf16.mxu0 0
  %926 = vmatpush1.bf16.msra.mxu0 0
  %927 = vmatprep.subr.bf16.mxu0 0
  %928 = vmatpush1.bf16.msra.mxu0 0
  %929 = vmatprep.subr.bf16.mxu0 0
  %930 = vmatpush1.bf16.msra.mxu0 0
  %931 = vmatprep.subr.bf16.mxu0 0
  %932 = vmatpush1.bf16.msra.mxu0 0
  %933 = vmatprep.mubr.bf16.mxu0 0
  %934 = vmatmul.mubr.bf16.gmra.mrb[0].mxu0 %v899
  %v935 = vpop.f32.mrb[0].mxu0
  %v936 = vadd.f32 0.0, %v935
  %v937 = vpop.f32.mrb[0].mxu0
  %v938 = vpop.f32.mrb[0].mxu0
  %v939 = vpop.f32.mrb[0].mxu0
  %940 = vdwg.mxu0
  %v941 = vadd.f32 %v893, %v936
  %v942 = vxor.u32 %v941, 2147483648
  %v943 = vmul.f32 %v942, 1.442695
  %v944 = vpow.pop %v943
  %v945 = vadd.f32 %v944, 1.0
  %v946 = vrcp.pop %v945
  %v947 = vmul.f32 1.0, %v946
  %v948 = vadd.f32 %v936, %v502
  %950 = vrot.lane.b32.xlu0 %v948, 64
  %v951 = vpop.permute.xlu0 %950
  %v953 = vmul.f32 %v947, %v951
  %955 = vrot.lane.b32.xlu0 %v953, 64
  %v956 = vpop.permute.xlu0 %955
  %v958 = vadd.f32 %v893, %v956
  %v959 = vtanh.pop %v958
  %v960 = vsub.f32 1.0, %v947
  %962 = vrot.lane.b32.xlu0 %v959, 96
  %v963 = vpop.permute.xlu0 %962
  %v965 = vmul.f32 %v960, %v963
  %v966 = vmul.f32 %v947, %v857
  %v967 = vadd.f32 %v965, %v966
  %v968 = vld [vmem:[%s248] sm:$0x1]
  %v969 = vunpack.c.l.bf16 %v968
  %v972 = vunpack.c.l.s4 1983009808
  %v973 = vunpack.c.0.s8 %v972
  %v974 = vlaneseq
  %v975 = vshrl.u32 %v974, 7
  %v976 = vsub.s32 %v973, %v975
  %v977 = vrot.slane %v969, %v976
  %978 = vrot.lane.b32.xlu0 %v977, 32
  %v979 = vpop.permute.xlu0 %978
  %v981 = vadd.f32 %v967, %v979
  %v982 = vpack.c.bf16 %v981, %v981
  %v985 = vunpack.c.l.s4 1966171168
  %v986 = vunpack.c.0.s8 %v985
  %v987 = vlaneseq
  %v988 = vshrl.u32 %v987, 7
  %v989 = vsub.s32 %v986, %v988
  %v990 = vrot.slane %v982, %v989
  %v992 = vunpack.c.l.s4 1966171168
  %v993 = vunpack.c.0.s8 %v992
  %v994 = vlaneseq
  %v995 = vshrl.u32 %v994, 7
  %v996 = vsub.s32 %v993, %v995
  %v997 = vrot.slane %v990, %v996
  %998 = vrot.lane.b32.xlu0 %v997, 96
  %v999 = vpop.permute.xlu0 %998
  %s1001 = scalar_lea.vmem %s5, 4
  %1002 = vst.msk [vmem:[%s1001] sm:$0x1] %vm561, %v999
  %v1003 = vld [vmem:[%s340] sm:$0x3]
  %v1004 = vpack.c.bf16 %v967, %v967
  %1006 = vrot.lane.b32.xlu0 %v1004, 96
  %v1007 = vpop.permute.xlu0 %1006
  %v1009 = vsel %vm61, %v1007, 0
  %1011 = vmatprep.subr.bf16.mxu0 0
  %1012 = vmatpush1.bf16.msra.mxu0 %v447
  %1013 = vmatprep.subr.bf16.mxu0 0
  %1014 = vmatpush1.bf16.msra.mxu0 %v448
  %1015 = vmatprep.subr.bf16.mxu0 0
  %1016 = vmatpush1.bf16.msra.mxu0 0
  %1017 = vmatprep.subr.bf16.mxu0 0
  %1018 = vmatpush1.bf16.msra.mxu0 0
  %1019 = vmatprep.subr.bf16.mxu0 0
  %1020 = vmatpush1.bf16.msra.mxu0 0
  %1021 = vmatprep.subr.bf16.mxu0 0
  %1022 = vmatpush1.bf16.msra.mxu0 0
  %1023 = vmatprep.subr.bf16.mxu0 0
  %1024 = vmatpush1.bf16.msra.mxu0 0
  %1025 = vmatprep.subr.bf16.mxu0 0
  %1026 = vmatpush1.bf16.msra.mxu0 0
  %1027 = vmatprep.subr.bf16.mxu0 0
  %1028 = vmatpush1.bf16.msra.mxu0 0
  %1029 = vmatprep.subr.bf16.mxu0 0
  %1030 = vmatpush1.bf16.msra.mxu0 0
  %1031 = vmatprep.subr.bf16.mxu0 0
  %1032 = vmatpush1.bf16.msra.mxu0 0
  %1033 = vmatprep.subr.bf16.mxu0 0
  %1034 = vmatpush1.bf16.msra.mxu0 0
  %1035 = vmatprep.subr.bf16.mxu0 0
  %1036 = vmatpush1.bf16.msra.mxu0 0
  %1037 = vmatprep.subr.bf16.mxu0 0
  %1038 = vmatpush1.bf16.msra.mxu0 0
  %1039 = vmatprep.subr.bf16.mxu0 0
  %1040 = vmatpush1.bf16.msra.mxu0 0
  %1041 = vmatprep.subr.bf16.mxu0 0
  %1042 = vmatpush1.bf16.msra.mxu0 0
  %1043 = vmatprep.mubr.bf16.mxu0 0
  %1044 = vmatmul.mubr.bf16.gmra.mrb[0].mxu0 %v1009
  %v1045 = vpop.f32.mrb[0].mxu0
  %v1046 = vadd.f32 0.0, %v1045
  %v1047 = vpop.f32.mrb[0].mxu0
  %v1048 = vpop.f32.mrb[0].mxu0
  %v1049 = vpop.f32.mrb[0].mxu0
  %1050 = vdwg.mxu0
  %v1051 = vadd.f32 %v1003, %v1046
  %v1052 = vxor.u32 %v1051, 2147483648
  %v1053 = vmul.f32 %v1052, 1.442695
  %v1054 = vpow.pop %v1053
  %v1055 = vadd.f32 %v1054, 1.0
  %v1056 = vrcp.pop %v1055
  %v1057 = vmul.f32 1.0, %v1056
  %v1058 = vadd.f32 %v1046, %v502
  %1060 = vrot.lane.b32.xlu0 %v1058, 64
  %v1061 = vpop.permute.xlu0 %1060
  %v1063 = vmul.f32 %v1057, %v1061
  %1065 = vrot.lane.b32.xlu0 %v1063, 64
  %v1066 = vpop.permute.xlu0 %1065
  %v1068 = vadd.f32 %v1003, %v1066
  %v1069 = vtanh.pop %v1068
  %v1070 = vsub.f32 1.0, %v1057
  %1072 = vrot.lane.b32.xlu0 %v1069, 96
  %v1073 = vpop.permute.xlu0 %1072
  %v1075 = vmul.f32 %v1070, %v1073
  %v1076 = vmul.f32 %v1057, %v967
  %v1077 = vadd.f32 %v1075, %v1076
  %v1078 = vld [vmem:[%s295] sm:$0x1]
  %v1079 = vunpack.c.l.bf16 %v1078
  %v1082 = vunpack.c.l.s4 1983009808
  %v1083 = vunpack.c.0.s8 %v1082
  %v1084 = vlaneseq
  %v1085 = vshrl.u32 %v1084, 7
  %v1086 = vsub.s32 %v1083, %v1085
  %v1087 = vrot.slane %v1079, %v1086
  %1088 = vrot.lane.b32.xlu0 %v1087, 32
  %v1089 = vpop.permute.xlu0 %1088
  %v1091 = vadd.f32 %v1077, %v1089
  %v1092 = vpack.c.bf16 %v1091, %v1091
  %v1095 = vunpack.c.l.s4 1966171168
  %v1096 = vunpack.c.0.s8 %v1095
  %v1097 = vlaneseq
  %v1098 = vshrl.u32 %v1097, 7
  %v1099 = vsub.s32 %v1096, %v1098
  %v1100 = vrot.slane %v1092, %v1099
  %v1102 = vunpack.c.l.s4 1966171168
  %v1103 = vunpack.c.0.s8 %v1102
  %v1104 = vlaneseq
  %v1105 = vshrl.u32 %v1104, 7
  %v1106 = vsub.s32 %v1103, %v1105
  %v1107 = vrot.slane %v1100, %v1106
  %1108 = vrot.lane.b32.xlu0 %v1107, 96
  %v1109 = vpop.permute.xlu0 %1108
  %s1111 = scalar_lea.vmem %s5, 5
  %1112 = vst.msk [vmem:[%s1111] sm:$0x1] %vm561, %v1109
  %v1113 = vld [vmem:[%s387] sm:$0x3]
  %v1114 = vpack.c.bf16 %v1077, %v1077
  %1116 = vrot.lane.b32.xlu0 %v1114, 96
  %v1117 = vpop.permute.xlu0 %1116
  %v1119 = vsel %vm61, %v1117, 0
  %1121 = vmatprep.subr.bf16.mxu0 0
  %1122 = vmatpush1.bf16.msra.mxu0 %v447
  %1123 = vmatprep.subr.bf16.mxu0 0
  %1124 = vmatpush1.bf16.msra.mxu0 %v448
  %1125 = vmatprep.subr.bf16.mxu0 0
  %1126 = vmatpush1.bf16.msra.mxu0 0
  %1127 = vmatprep.subr.bf16.mxu0 0
  %1128 = vmatpush1.bf16.msra.mxu0 0
  %1129 = vmatprep.subr.bf16.mxu0 0
  %1130 = vmatpush1.bf16.msra.mxu0 0
  %1131 = vmatprep.subr.bf16.mxu0 0
  %1132 = vmatpush1.bf16.msra.mxu0 0
  %1133 = vmatprep.subr.bf16.mxu0 0
  %1134 = vmatpush1.bf16.msra.mxu0 0
  %1135 = vmatprep.subr.bf16.mxu0 0
  %1136 = vmatpush1.bf16.msra.mxu0 0
  %1137 = vmatprep.subr.bf16.mxu0 0
  %1138 = vmatpush1.bf16.msra.mxu0 0
  %1139 = vmatprep.subr.bf16.mxu0 0
  %1140 = vmatpush1.bf16.msra.mxu0 0
  %1141 = vmatprep.subr.bf16.mxu0 0
  %1142 = vmatpush1.bf16.msra.mxu0 0
  %1143 = vmatprep.subr.bf16.mxu0 0
  %1144 = vmatpush1.bf16.msra.mxu0 0
  %1145 = vmatprep.subr.bf16.mxu0 0
  %1146 = vmatpush1.bf16.msra.mxu0 0
  %1147 = vmatprep.subr.bf16.mxu0 0
  %1148 = vmatpush1.bf16.msra.mxu0 0
  %1149 = vmatprep.subr.bf16.mxu0 0
  %1150 = vmatpush1.bf16.msra.mxu0 0
  %1151 = vmatprep.subr.bf16.mxu0 0
  %1152 = vmatpush1.bf16.msra.mxu0 0
  %1153 = vmatprep.mubr.bf16.mxu0 0
  %1154 = vmatmul.mubr.bf16.gmra.mrb[0].mxu0 %v1119
  %v1155 = vpop.f32.mrb[0].mxu0
  %v1156 = vadd.f32 0.0, %v1155
  %v1157 = vpop.f32.mrb[0].mxu0
  %v1158 = vpop.f32.mrb[0].mxu0
  %v1159 = vpop.f32.mrb[0].mxu0
  %1160 = vdwg.mxu0
  %v1161 = vadd.f32 %v1113, %v1156
  %v1162 = vxor.u32 %v1161, 2147483648
  %v1163 = vmul.f32 %v1162, 1.442695
  %v1164 = vpow.pop %v1163
  %v1165 = vadd.f32 %v1164, 1.0
  %v1166 = vrcp.pop %v1165
  %v1167 = vmul.f32 1.0, %v1166
  %v1168 = vadd.f32 %v1156, %v502
  %1170 = vrot.lane.b32.xlu0 %v1168, 64
  %v1171 = vpop.permute.xlu0 %1170
  %v1173 = vmul.f32 %v1167, %v1171
  %1175 = vrot.lane.b32.xlu0 %v1173, 64
  %v1176 = vpop.permute.xlu0 %1175
  %v1178 = vadd.f32 %v1113, %v1176
  %v1179 = vtanh.pop %v1178
  %v1180 = vsub.f32 1.0, %v1167
  %1182 = vrot.lane.b32.xlu0 %v1179, 96
  %v1183 = vpop.permute.xlu0 %1182
  %v1185 = vmul.f32 %v1180, %v1183
  %v1186 = vmul.f32 %v1167, %v1077
  %v1187 = vadd.f32 %v1185, %v1186
  %v1188 = vld [vmem:[%s342] sm:$0x1]
  %v1189 = vunpack.c.l.bf16 %v1188
  %v1192 = vunpack.c.l.s4 1983009808
  %v1193 = vunpack.c.0.s8 %v1192
  %v1194 = vlaneseq
  %v1195 = vshrl.u32 %v1194, 7
  %v1196 = vsub.s32 %v1193, %v1195
  %v1197 = vrot.slane %v1189, %v1196
  %1198 = vrot.lane.b32.xlu0 %v1197, 32
  %v1199 = vpop.permute.xlu0 %1198
  %v1201 = vadd.f32 %v1187, %v1199
  %v1202 = vpack.c.bf16 %v1201, %v1201
  %v1205 = vunpack.c.l.s4 1966171168
  %v1206 = vunpack.c.0.s8 %v1205
  %v1207 = vlaneseq
  %v1208 = vshrl.u32 %v1207, 7
  %v1209 = vsub.s32 %v1206, %v1208
  %v1210 = vrot.slane %v1202, %v1209
  %v1212 = vunpack.c.l.s4 1966171168
  %v1213 = vunpack.c.0.s8 %v1212
  %v1214 = vlaneseq
  %v1215 = vshrl.u32 %v1214, 7
  %v1216 = vsub.s32 %v1213, %v1215
  %v1217 = vrot.slane %v1210, %v1216
  %1218 = vrot.lane.b32.xlu0 %v1217, 96
  %v1219 = vpop.permute.xlu0 %1218
  %s1221 = scalar_lea.vmem %s5, 6
  %1222 = vst.msk [vmem:[%s1221] sm:$0x1] %vm561, %v1219
  %v1223 = vld [vmem:[%s434] sm:$0x3]
  %v1224 = vpack.c.bf16 %v1187, %v1187
  %1226 = vrot.lane.b32.xlu0 %v1224, 96
  %v1227 = vpop.permute.xlu0 %1226
  %v1229 = vsel %vm61, %v1227, 0
  %1231 = vmatprep.subr.bf16.mxu0 0
  %1232 = vmatpush1.bf16.msra.mxu0 %v447
  %1233 = vmatprep.subr.bf16.mxu0 0
  %1234 = vmatpush1.bf16.msra.mxu0 %v448
  %1235 = vmatprep.subr.bf16.mxu0 0
  %1236 = vmatpush1.bf16.msra.mxu0 0
  %1237 = vmatprep.subr.bf16.mxu0 0
  %1238 = vmatpush1.bf16.msra.mxu0 0
  %1239 = vmatprep.subr.bf16.mxu0 0
  %1240 = vmatpush1.bf16.msra.mxu0 0
  %1241 = vmatprep.subr.bf16.mxu0 0
  %1242 = vmatpush1.bf16.msra.mxu0 0
  %1243 = vmatprep.subr.bf16.mxu0 0
  %1244 = vmatpush1.bf16.msra.mxu0 0
  %1245 = vmatprep.subr.bf16.mxu0 0
  %1246 = vmatpush1.bf16.msra.mxu0 0
  %1247 = vmatprep.subr.bf16.mxu0 0
  %1248 = vmatpush1.bf16.msra.mxu0 0
  %1249 = vmatprep.subr.bf16.mxu0 0
  %1250 = vmatpush1.bf16.msra.mxu0 0
  %1251 = vmatprep.subr.bf16.mxu0 0
  %1252 = vmatpush1.bf16.msra.mxu0 0
  %1253 = vmatprep.subr.bf16.mxu0 0
  %1254 = vmatpush1.bf16.msra.mxu0 0
  %1255 = vmatprep.subr.bf16.mxu0 0
  %1256 = vmatpush1.bf16.msra.mxu0 0
  %1257 = vmatprep.subr.bf16.mxu0 0
  %1258 = vmatpush1.bf16.msra.mxu0 0
  %1259 = vmatprep.subr.bf16.mxu0 0
  %1260 = vmatpush1.bf16.msra.mxu0 0
  %1261 = vmatprep.subr.bf16.mxu0 0
  %1262 = vmatpush1.bf16.msra.mxu0 0
  %1263 = vmatprep.mubr.bf16.mxu0 0
  %1264 = vmatmul.mubr.bf16.gmra.mrb[0].mxu0 %v1229
  %v1265 = vpop.f32.mrb[0].mxu0
  %v1266 = vadd.f32 0.0, %v1265
  %v1267 = vpop.f32.mrb[0].mxu0
  %v1268 = vpop.f32.mrb[0].mxu0
  %v1269 = vpop.f32.mrb[0].mxu0
  %1270 = vdwg.mxu0
  %v1271 = vadd.f32 %v1223, %v1266
  %v1272 = vxor.u32 %v1271, 2147483648
  %v1273 = vmul.f32 %v1272, 1.442695
  %v1274 = vpow.pop %v1273
  %v1275 = vadd.f32 %v1274, 1.0
  %v1276 = vrcp.pop %v1275
  %v1277 = vmul.f32 1.0, %v1276
  %v1278 = vadd.f32 %v1266, %v502
  %1280 = vrot.lane.b32.xlu0 %v1278, 64
  %v1281 = vpop.permute.xlu0 %1280
  %v1283 = vmul.f32 %v1277, %v1281
  %1285 = vrot.lane.b32.xlu0 %v1283, 64
  %v1286 = vpop.permute.xlu0 %1285
  %v1288 = vadd.f32 %v1223, %v1286
  %v1289 = vtanh.pop %v1288
  %v1290 = vsub.f32 1.0, %v1277
  %1292 = vrot.lane.b32.xlu0 %v1289, 96
  %v1293 = vpop.permute.xlu0 %1292
  %v1295 = vmul.f32 %v1290, %v1293
  %v1296 = vmul.f32 %v1277, %v1187
  %v1297 = vadd.f32 %v1295, %v1296
  %v1298 = vld [vmem:[%s389] sm:$0x1]
  %v1299 = vunpack.c.l.bf16 %v1298
  %v1302 = vunpack.c.l.s4 1983009808
  %v1303 = vunpack.c.0.s8 %v1302
  %v1304 = vlaneseq
  %v1305 = vshrl.u32 %v1304, 7
  %v1306 = vsub.s32 %v1303, %v1305
  %v1307 = vrot.slane %v1299, %v1306
  %1308 = vrot.lane.b32.xlu0 %v1307, 32
  %v1309 = vpop.permute.xlu0 %1308
  %v1311 = vadd.f32 %v1297, %v1309
  %v1312 = vpack.c.bf16 %v1311, %v1311
  %v1315 = vunpack.c.l.s4 1966171168
  %v1316 = vunpack.c.0.s8 %v1315
  %v1317 = vlaneseq
  %v1318 = vshrl.u32 %v1317, 7
  %v1319 = vsub.s32 %v1316, %v1318
  %v1320 = vrot.slane %v1312, %v1319
  %v1322 = vunpack.c.l.s4 1966171168
  %v1323 = vunpack.c.0.s8 %v1322
  %v1324 = vlaneseq
  %v1325 = vshrl.u32 %v1324, 7
  %v1326 = vsub.s32 %v1323, %v1325
  %v1327 = vrot.slane %v1320, %v1326
  %1328 = vrot.lane.b32.xlu0 %v1327, 96
  %v1329 = vpop.permute.xlu0 %1328
  %s1331 = scalar_lea.vmem %s5, 7
  %1332 = vst.msk [vmem:[%s1331] sm:$0x1] %vm561, %v1329
  %1334 = vrot.lane.b32.xlu0 %v1297, 96
  %v1335 = vpop.permute.xlu0 %1334
  %vm1337 = vcmask 254976
  %1338 = vst.msk [vmem:[#allocation2] sm:$0x3] %vm1337, %v1335
  // Predicated region
  $region26: #{apc_forward.6} parent=0 // pred_check
    _
  $region27: #{apc_forward.6} parent=0 // pred_check_branch
    %1340 = sbr.rel (0) target = $region29
  $region28: #{apc_forward.6} parent=0 // pred_region
    _
  $region29: #{apc_forward.6} parent=0 // pred_fallthru
    _
  // Predicated region
  $region30: #{apc_forward.6} parent=0 // pred_check
    _
  $region31: #{apc_forward.6} parent=0 // pred_check_branch
    %1342 = sbr.rel (0) target = $region33
  $region32: #{apc_forward.6} parent=0 // pred_region
    _
  $region33: #{apc_forward.6} parent=0 // pred_fallthru
    _

</llo_original>
